<compile_context>
chip_gen: v7x
topology: tpu7x:2x2x1
jax: 0.10.0
libtpu: 0.0.40
codegen_flags: <defaults>
</compile_context>

<pallas_src>
import jax
import jax.numpy as jnp
from jax import lax
from jax.experimental import pallas as pl
from jax.experimental.pallas import tpu as pltpu


# ------------------------------- Pallas kernel -------------------------------

def _elu(y):
    # clamp exp argument so the unselected lane never overflows
    return jnp.where(y > 0, y, jnp.exp(jnp.minimum(y, 0.0)) - 1.0)


def _meta_gat_fused_kernel(row_ref, col_ref, row_t_ref, x_ref,
                           in_w_ref, in_b_ref,
                           mw_ref, attr_ref, attc_ref, red_ref,
                           hw1_ref, hb1_ref, hw2_ref, hb2_ref,
                           o_ref):
    f32, bf16 = jnp.float32, jnp.bfloat16
    num_layers = mw_ref.shape[0]
    n_nodes = x_ref.shape[0]
    n_edges = row_ref.shape[0]
    hf = mw_ref.shape[2]                                                    # heads * hidden (128)

    # -- edge gather & scatter one-hots: built ONCE, 0/1 exact in bf16 --
    node_ids = lax.broadcasted_iota(jnp.int32, (n_edges, n_nodes), 1)       # [E, N]
    row_oh = (row_ref[...] == node_ids).astype(bf16)                        # gather at row
    col_oh = (col_ref[...] == node_ids).astype(bf16)                        # gather at col
    gather_oh = jnp.concatenate([row_oh, col_oh], axis=1)                   # [E, 2N] fused gather
    node_iota = lax.broadcasted_iota(jnp.int32, (n_nodes, n_edges), 0)      # [N, E]
    scat_oh = (row_t_ref[...] == node_iota).astype(bf16)                    # scatter-add to row

    # -- input_proj + ELU (Dropout = identity); bf16 operands, f32 accumulate --
    h = jnp.dot(x_ref[...].astype(bf16), in_w_ref[...],
                preferred_element_type=f32) + in_b_ref[...]
    h = _elu(h)                                                             # [N, hidden] f32

    # -- meta-attention layers: all heads batched into one lane-dense [*, H*F] slab --
    for l in range(num_layers):                                             # static unroll (L=2)
        xt = jnp.dot(h.astype(bf16), mw_ref[l], preferred_element_type=f32) # [N, H*F]
        xt_b = xt.astype(bf16)

        # per-node score halves, pre-replicated across each head's F lanes: [N, H*F]
        s_r = jnp.dot(xt_b, attr_ref[l], preferred_element_type=f32).astype(bf16)
        s_c = jnp.dot(xt_b, attc_ref[l], preferred_element_type=f32).astype(bf16)

        # ONE fused gather matmul (256-lane out):
        #   lanes [0:hf)   = s_r[row] + s_c[col]   (edge logits, head-replicated)
        #   lanes [hf:2hf) = x_t[col]              (value gather)
        stack = jnp.concatenate(
            [jnp.concatenate([s_r, jnp.zeros_like(xt_b)], axis=1),
             jnp.concatenate([s_c, xt_b], axis=1)], axis=0)                 # [2N, 2*H*F] bf16
        g = jnp.dot(gather_oh, stack, preferred_element_type=f32)           # [E, 2*H*F]
        e = g[:, :hf]
        x_col = g[:, hf:]

        # leaky_relu + softmax over ALL edges (dim=0 of the reference); attn Dropout = identity
        e = jnp.where(e >= 0, e, 0.01 * e)
        e = e - jnp.max(e, axis=0, keepdims=True)
        p = jnp.exp(e)
        alpha = p * pl.reciprocal(jnp.sum(p, axis=0, keepdims=True), approx=True)   # [E, H*F]

        # value path: scale gathered values, scatter-add to destination nodes
        vals = (alpha * x_col).astype(bf16)
        contrib = jnp.dot(scat_oh, vals, preferred_element_type=f32)        # [N, H*F]

        # weighted mean over heads (domain_weights / heads folded into red_ref), fused ELU
        h = _elu(jnp.dot(contrib.astype(bf16), red_ref[l],
                         preferred_element_type=f32))                       # [N, F]

    # -- SocialMediaHead: Linear -> ReLU -> (Dropout = identity) -> Linear (lane-dense out) --
    h1 = jnp.maximum(jnp.dot(h.astype(bf16), hw1_ref[...],
                             preferred_element_type=f32) + hb1_ref[...], 0.0)
    o_ref[...] = jnp.dot(h1.astype(bf16), hw2_ref[...],
                         preferred_element_type=f32) + hb2_ref[...]


# -------------------------- parameters & forward glue -------------------------

def init_params(key, in_channels, hidden, num_classes, num_layers, heads):
    def xavier(k, shape, fan_in, fan_out, gain=1.4142135623730951):
        std = gain * (2.0 / (fan_in + fan_out)) ** 0.5
        return (std * jax.random.normal(k, shape)).astype(jnp.float32)

    keys = iter(jax.random.split(key, 8 + 6 * num_layers))
    params = {
        "in_w": xavier(next(keys), (in_channels, hidden), in_channels, hidden, 1.0),
        "in_b": jnp.zeros((hidden,), jnp.float32),
        "layers": [],
        "head_w1": xavier(next(keys), (hidden, hidden // 2), hidden, hidden // 2, 1.0),
        "head_b1": jnp.zeros((hidden // 2,), jnp.float32),
        "head_w2": xavier(next(keys), (hidden // 2, num_classes), hidden // 2, num_classes, 1.0),
        "head_b2": jnp.zeros((num_classes,), jnp.float32),
    }
    # TODO(synk): the original __init__ sizes layer>0 / task-head inputs as hidden*heads,
    # which is shape-inconsistent with the mean-over-heads layer output [N, hidden]
    # (it only runs for heads==1); we size them by the actual forward data-flow (hidden).
    for _ in range(num_layers):
        f_in = hidden
        params["layers"].append({
            "meta_weight": xavier(next(keys), (heads, f_in, hidden), f_in, hidden),
            "meta_att": xavier(next(keys), (heads, 2 * hidden), heads, 2 * hidden),
            "dom_w": xavier(next(keys), (f_in, hidden), f_in, hidden, 1.0),
            "dom_b": jnp.zeros((hidden,), jnp.float32),
            "dom_att": xavier(next(keys), (heads, hidden), heads, hidden),
        })
    return params


def _pack_layer_params(params, domain_context, heads, f_out):
    """Repack per-head GAT params into head-batched, lane-dense bf16 slabs (pure-JAX glue)."""
    mw_all, attr_rep, attc_rep, red_all = [], [], [], []
    eye_h = jnp.eye(heads, dtype=jnp.float32)
    eye_f = jnp.eye(f_out, dtype=jnp.float32)
    rep = jnp.repeat(eye_h, f_out, axis=1)                              # [H, H*F] head->lanes
    for lp in params["layers"]:
        w = lp["meta_weight"]                                           # [H, F_in, F_out]
        mw_all.append(jnp.transpose(w, (1, 0, 2)).reshape(w.shape[1], heads * f_out))
        att = lp["meta_att"]                                            # [H, 2*F_out]
        a_r, a_c = att[:, :f_out], att[:, f_out:]
        attr_bd = (a_r[:, :, None] * eye_h[:, None, :]).reshape(heads * f_out, heads)
        attc_bd = (a_c[:, :, None] * eye_h[:, None, :]).reshape(heads * f_out, heads)
        # pre-replicate head scores across the head's F lanes -> lane-dense softmax in-kernel
        attr_rep.append(attr_bd @ rep)                                  # [H*F, H*F]
        attc_rep.append(attc_bd @ rep)
        if domain_context is None:
            dw = jnp.full((heads,), 1.0 / heads, jnp.float32)
        else:  # glue: domain_projection + softmax over heads
            dproj = domain_context @ lp["dom_w"] + lp["dom_b"]
            dw = jax.nn.softmax(dproj @ lp["dom_att"].T, axis=-1)
        red_all.append((dw[:, None, None] / heads * eye_f[None, :, :]).reshape(heads * f_out, f_out))
    bf = jnp.bfloat16
    return (jnp.stack(mw_all).astype(bf), jnp.stack(attr_rep).astype(bf),
            jnp.stack(attc_rep).astype(bf), jnp.stack(red_all).astype(bf))


def meta_gat_forward(params, x, row, col, domain_context=None):
    hidden = params["in_w"].shape[1]
    heads = params["layers"][0]["meta_weight"].shape[0]
    num_classes = params["head_w2"].shape[1]
    n = x.shape[0]
    n_edges = row.shape[0]
    bf = jnp.bfloat16

    mw_all, attr_rep, attc_rep, red_all = _pack_layer_params(params, domain_context,
                                                             heads, hidden)
    row_t = row.reshape(1, n_edges).astype(jnp.int32)

    # lane-dense output slab (unmasked vst); sliced back to num_classes below
    out_lanes = 128
    hw2 = jnp.zeros((params["head_w2"].shape[0], out_lanes), jnp.float32)
    hw2 = hw2.at[:, :num_classes].set(params["head_w2"])
    hb2 = jnp.zeros((1, out_lanes), jnp.float32).at[:, :num_classes].set(params["head_b2"])

    vmem_spec = pl.BlockSpec(memory_space=pltpu.MemorySpace.VMEM)
    out = pl.pallas_call(
        _meta_gat_fused_kernel,
        out_shape=jax.ShapeDtypeStruct((n, out_lanes), jnp.float32),
        in_specs=[vmem_spec] * 14,
        out_specs=vmem_spec,
        # Explicit scoped-VMEM budget that is safe across v5e/v6e/v7x at these shapes.
        compiler_params=pltpu.CompilerParams(vmem_limit_bytes=32 * 1024 * 1024),
    )(row, col, row_t, x,
      params["in_w"].astype(bf), params["in_b"].reshape(1, hidden),
      mw_all, attr_rep, attc_rep, red_all,
      params["head_w1"].astype(bf), params["head_b1"].reshape(1, -1),
      hw2.astype(bf), hb2)
    return out[:, :num_classes]


# ------------------------------ pure-JAX reference ----------------------------

def reference_forward(params, x, row, col):
    def elu(v):
        return jnp.where(v > 0, v, jnp.exp(v) - 1.0)

    heads = params["layers"][0]["meta_weight"].shape[0]
    r, c = row[:, 0], col[:, 0]
    n = x.shape[0]
    x = elu(x @ params["in_w"] + params["in_b"])
    for lp in params["layers"]:
        dw = jnp.full((heads,), 1.0 / heads, jnp.float32)
        outs = []
        for h in range(heads):
            w, att = lp["meta_weight"][h], lp["meta_att"][h]
            x_t = x @ w
            a = jnp.concatenate([x_t[r], x_t[c]], axis=-1) @ att
            a = jnp.where(a >= 0, a, 0.01 * a)
            a = jax.nn.softmax(a, axis=0)
            out_h = jnp.zeros((n, w.shape[1]), jnp.float32).at[r].add(a[:, None] * x_t[c])
            outs.append(out_h * dw[h])
        x = elu(jnp.mean(jnp.stack(outs), axis=0))
    h1 = jnp.maximum(x @ params["head_w1"] + params["head_b1"], 0.0)
    return h1 @ params["head_w2"] + params["head_b2"]


# ------------------------------------ main ------------------------------------

if __name__ == "__main__":
    key = jax.random.PRNGKey(0)
    N, E = 16, 64                     # nodes, edges
    in_channels, hidden, num_classes = 8, 32, 4
    num_layers, heads = 2, 4          # heads*hidden = 128 -> lane-dense head batching

    k_x, k_r, k_c, k_p = jax.random.split(key, 4)
    x = jax.random.normal(k_x, (N, in_channels), jnp.float32)
    row = jax.random.randint(k_r, (E, 1), 0, N, jnp.int32)
    col = jax.random.randint(k_c, (E, 1), 0, N, jnp.int32)
    params = init_params(k_p, in_channels, hidden, num_classes, num_layers, heads)

    fwd = jax.jit(meta_gat_forward)
    out = jax.block_until_ready(fwd(params, x, row, col))
    assert out.shape == (N, num_classes), out.shape
    assert bool(jnp.all(jnp.isfinite(out)))

    # f32 reference; tolerance covers bf16 operand rounding on the weight path.
    ref = jax.block_until_ready(reference_forward(params, x, row, col))
    assert jnp.allclose(out, ref, atol=3e-2, rtol=3e-2), float(jnp.max(jnp.abs(out - ref)))

    print("KERNEL_OK")
</pallas_src>

<mosaic_0001>
module attributes {stable_mosaic.version = 11 : i64} {
  func.func @_meta_gat_fused_kernel(%arg0: memref<64x1xi32, #tpu.memory_space<vmem>>, %arg1: memref<64x1xi32, #tpu.memory_space<vmem>>, %arg2: memref<1x64xi32, #tpu.memory_space<vmem>>, %arg3: memref<16x8xf32, #tpu.memory_space<vmem>>, %arg4: memref<8x32xbf16, #tpu.memory_space<vmem>>, %arg5: memref<1x32xf32, #tpu.memory_space<vmem>>, %arg6: memref<2x32x128xbf16, #tpu.memory_space<vmem>>, %arg7: memref<2x128x128xbf16, #tpu.memory_space<vmem>>, %arg8: memref<2x128x128xbf16, #tpu.memory_space<vmem>>, %arg9: memref<2x128x32xbf16, #tpu.memory_space<vmem>>, %arg10: memref<32x16xbf16, #tpu.memory_space<vmem>>, %arg11: memref<1x16xf32, #tpu.memory_space<vmem>>, %arg12: memref<16x128xbf16, #tpu.memory_space<vmem>>, %arg13: memref<1x128xf32, #tpu.memory_space<vmem>>, %arg14: memref<16x128xf32, #tpu.memory_space<vmem>>) attributes {dimension_semantics = [], scalar_prefetch = 0 : i64, scratch_operands = 0 : i64, tpu.core_type = #tpu.core_type<tc>} {
    %0 = tpu.iota {dimensions = array<i32: 1>} : vector<64x16xi32>
    %c0 = arith.constant 0 : index
    %c0_0 = arith.constant 0 : index
    %1 = vector.load %arg0[%c0, %c0_0] : memref<64x1xi32, #tpu.memory_space<vmem>>, vector<64x1xi32>
    %2 = vector.broadcast %1 : vector<64x1xi32> to vector<64x16xi32>
    %3 = arith.cmpi eq, %2, %0 : vector<64x16xi32>
    %4 = arith.extui %3 : vector<64x16xi1> to vector<64x16xi32>
    %5 = arith.sitofp %4 : vector<64x16xi32> to vector<64x16xf32>
    %6 = arith.truncf %5 : vector<64x16xf32> to vector<64x16xbf16>
    %c0_1 = arith.constant 0 : index
    %c0_2 = arith.constant 0 : index
    %7 = vector.load %arg1[%c0_1, %c0_2] : memref<64x1xi32, #tpu.memory_space<vmem>>, vector<64x1xi32>
    %8 = vector.broadcast %7 : vector<64x1xi32> to vector<64x16xi32>
    %9 = arith.cmpi eq, %8, %0 : vector<64x16xi32>
    %10 = arith.extui %9 : vector<64x16xi1> to vector<64x16xi32>
    %11 = arith.sitofp %10 : vector<64x16xi32> to vector<64x16xf32>
    %12 = arith.truncf %11 : vector<64x16xf32> to vector<64x16xbf16>
    %13 = tpu.concatenate %6, %12 in 1 : vector<64x16xbf16>, vector<64x16xbf16> -> vector<64x32xbf16>
    %14 = tpu.iota {dimensions = array<i32: 0>} : vector<16x64xi32>
    %c0_3 = arith.constant 0 : index
    %c0_4 = arith.constant 0 : index
    %15 = vector.load %arg2[%c0_3, %c0_4] : memref<1x64xi32, #tpu.memory_space<vmem>>, vector<1x64xi32>
    %16 = vector.broadcast %15 : vector<1x64xi32> to vector<16x64xi32>
    %17 = arith.cmpi eq, %16, %14 : vector<16x64xi32>
    %18 = arith.extui %17 : vector<16x64xi1> to vector<16x64xi32>
    %19 = arith.sitofp %18 : vector<16x64xi32> to vector<16x64xf32>
    %20 = arith.truncf %19 : vector<16x64xf32> to vector<16x64xbf16>
    %c0_5 = arith.constant 0 : index
    %c0_6 = arith.constant 0 : index
    %21 = vector.load %arg3[%c0_5, %c0_6] : memref<16x8xf32, #tpu.memory_space<vmem>>, vector<16x8xf32>
    %22 = arith.truncf %21 : vector<16x8xf32> to vector<16x8xbf16>
    %c0_7 = arith.constant 0 : index
    %c0_8 = arith.constant 0 : index
    %23 = vector.load %arg4[%c0_7, %c0_8] : memref<8x32xbf16, #tpu.memory_space<vmem>>, vector<8x32xbf16>
    %cst = arith.constant dense<0.000000e+00> : vector<16x32xf32>
    %24 = tpu.matmul %22, %23, %cst {dimension_numbers = #tpu.dot_dimension_numbers<[1], [0], [0], [1], [0, 0, 1, 1], [], []>} : vector<16x8xbf16>, vector<8x32xbf16>, vector<16x32xf32> -> vector<16x32xf32>
    %c0_9 = arith.constant 0 : index
    %c0_10 = arith.constant 0 : index
    %25 = vector.load %arg5[%c0_9, %c0_10] : memref<1x32xf32, #tpu.memory_space<vmem>>, vector<1x32xf32>
    %26 = vector.broadcast %25 : vector<1x32xf32> to vector<16x32xf32>
    %27 = arith.addf %24, %26 : vector<16x32xf32>
    %cst_11 = arith.constant 0.000000e+00 : f32
    %28 = vector.broadcast %cst_11 : f32 to vector<16x32xf32>
    %29 = arith.cmpf ogt, %27, %28 : vector<16x32xf32>
    %cst_12 = arith.constant 0.000000e+00 : f32
    %30 = vector.broadcast %cst_12 : f32 to vector<16x32xf32>
    %31 = arith.minimumf %27, %30 : vector<16x32xf32>
    %32 = math.exp %31 : vector<16x32xf32>
    %cst_13 = arith.constant 1.000000e+00 : f32
    %33 = vector.broadcast %cst_13 : f32 to vector<16x32xf32>
    %34 = arith.subf %32, %33 : vector<16x32xf32>
    %35 = arith.select %29, %27, %34 : vector<16x32xi1>, vector<16x32xf32>
    %36 = arith.truncf %35 : vector<16x32xf32> to vector<16x32xbf16>
    %c0_14 = arith.constant 0 : index
    %c0_15 = arith.constant 0 : index
    %c0_16 = arith.constant 0 : index
    %37 = vector.load %arg6[%c0_14, %c0_15, %c0_16] : memref<2x32x128xbf16, #tpu.memory_space<vmem>>, vector<1x32x128xbf16>
    %38 = vector.shape_cast %37 : vector<1x32x128xbf16> to vector<32x128xbf16>
    %cst_17 = arith.constant dense<0.000000e+00> : vector<16x128xf32>
    %39 = tpu.matmul %36, %38, %cst_17 {dimension_numbers = #tpu.dot_dimension_numbers<[1], [0], [0], [1], [0, 0, 1, 1], [], []>} : vector<16x32xbf16>, vector<32x128xbf16>, vector<16x128xf32> -> vector<16x128xf32>
    %40 = arith.truncf %39 : vector<16x128xf32> to vector<16x128xbf16>
    %c0_18 = arith.constant 0 : index
    %c0_19 = arith.constant 0 : index
    %c0_20 = arith.constant 0 : index
    %41 = vector.load %arg7[%c0_18, %c0_19, %c0_20] : memref<2x128x128xbf16, #tpu.memory_space<vmem>>, vector<1x128x128xbf16>
    %42 = vector.shape_cast %41 : vector<1x128x128xbf16> to vector<128x128xbf16>
    %cst_21 = arith.constant dense<0.000000e+00> : vector<16x128xf32>
    %43 = tpu.matmul %40, %42, %cst_21 {dimension_numbers = #tpu.dot_dimension_numbers<[1], [0], [0], [1], [0, 0, 1, 1], [], []>} : vector<16x128xbf16>, vector<128x128xbf16>, vector<16x128xf32> -> vector<16x128xf32>
    %44 = arith.truncf %43 : vector<16x128xf32> to vector<16x128xbf16>
    %c0_22 = arith.constant 0 : index
    %c0_23 = arith.constant 0 : index
    %c0_24 = arith.constant 0 : index
    %45 = vector.load %arg8[%c0_22, %c0_23, %c0_24] : memref<2x128x128xbf16, #tpu.memory_space<vmem>>, vector<1x128x128xbf16>
    %46 = vector.shape_cast %45 : vector<1x128x128xbf16> to vector<128x128xbf16>
    %cst_25 = arith.constant dense<0.000000e+00> : vector<16x128xf32>
    %47 = tpu.matmul %40, %46, %cst_25 {dimension_numbers = #tpu.dot_dimension_numbers<[1], [0], [0], [1], [0, 0, 1, 1], [], []>} : vector<16x128xbf16>, vector<128x128xbf16>, vector<16x128xf32> -> vector<16x128xf32>
    %48 = arith.truncf %47 : vector<16x128xf32> to vector<16x128xbf16>
    %cst_26 = arith.constant 0.000000e+00 : bf16
    %49 = vector.broadcast %cst_26 : bf16 to vector<16x128xbf16>
    %50 = tpu.concatenate %44, %49 in 1 : vector<16x128xbf16>, vector<16x128xbf16> -> vector<16x256xbf16>
    %51 = tpu.concatenate %48, %40 in 1 : vector<16x128xbf16>, vector<16x128xbf16> -> vector<16x256xbf16>
    %52 = tpu.concatenate %50, %51 in 0 : vector<16x256xbf16>, vector<16x256xbf16> -> vector<32x256xbf16>
    %cst_27 = arith.constant dense<0.000000e+00> : vector<64x256xf32>
    %53 = tpu.matmul %13, %52, %cst_27 {dimension_numbers = #tpu.dot_dimension_numbers<[1], [0], [0], [1], [0, 0, 1, 1], [], []>} : vector<64x32xbf16>, vector<32x256xbf16>, vector<64x256xf32> -> vector<64x256xf32>
    %54 = vector.extract_strided_slice %53 {offsets = [0, 0], sizes = [64, 128], strides = [1, 1]} : vector<64x256xf32> to vector<64x128xf32>
    %55 = vector.extract_strided_slice %53 {offsets = [0, 128], sizes = [64, 128], strides = [1, 1]} : vector<64x256xf32> to vector<64x128xf32>
    %cst_28 = arith.constant 0.000000e+00 : f32
    %56 = vector.broadcast %cst_28 : f32 to vector<64x128xf32>
    %57 = arith.cmpf oge, %54, %56 : vector<64x128xf32>
    %cst_29 = arith.constant 0.00999999977 : f32
    %58 = vector.broadcast %cst_29 : f32 to vector<64x128xf32>
    %59 = arith.mulf %58, %54 : vector<64x128xf32>
    %60 = arith.select %57, %54, %59 : vector<64x128xi1>, vector<64x128xf32>
    %cst_30 = arith.constant dense<0xFF800000> : vector<128xf32>
    %61 = vector.multi_reduction <maximumf>, %60, %cst_30 [0] : vector<64x128xf32> to vector<128xf32>
    %62 = vector.shape_cast %61 : vector<128xf32> to vector<1x128xf32>
    %63 = vector.broadcast %62 : vector<1x128xf32> to vector<64x128xf32>
    %64 = arith.subf %60, %63 : vector<64x128xf32>
    %65 = math.exp %64 : vector<64x128xf32>
    %cst_31 = arith.constant dense<0.000000e+00> : vector<128xf32>
    %66 = vector.multi_reduction <add>, %65, %cst_31 [0] : vector<64x128xf32> to vector<128xf32>
    %67 = vector.shape_cast %66 : vector<128xf32> to vector<1x128xf32>
    %68 = tpu.reciprocal %67 {approx = true} : vector<1x128xf32> -> vector<1x128xf32>
    %69 = vector.broadcast %68 : vector<1x128xf32> to vector<64x128xf32>
    %70 = arith.mulf %65, %69 : vector<64x128xf32>
    %71 = arith.mulf %70, %55 : vector<64x128xf32>
    %72 = arith.truncf %71 : vector<64x128xf32> to vector<64x128xbf16>
    %cst_32 = arith.constant dense<0.000000e+00> : vector<16x128xf32>
    %73 = tpu.matmul %20, %72, %cst_32 {dimension_numbers = #tpu.dot_dimension_numbers<[1], [0], [0], [1], [0, 0, 1, 1], [], []>} : vector<16x64xbf16>, vector<64x128xbf16>, vector<16x128xf32> -> vector<16x128xf32>
    %74 = arith.truncf %73 : vector<16x128xf32> to vector<16x128xbf16>
    %c0_33 = arith.constant 0 : index
    %c0_34 = arith.constant 0 : index
    %c0_35 = arith.constant 0 : index
    %75 = vector.load %arg9[%c0_33, %c0_34, %c0_35] : memref<2x128x32xbf16, #tpu.memory_space<vmem>>, vector<1x128x32xbf16>
    %76 = vector.shape_cast %75 : vector<1x128x32xbf16> to vector<128x32xbf16>
    %cst_36 = arith.constant dense<0.000000e+00> : vector<16x32xf32>
    %77 = tpu.matmul %74, %76, %cst_36 {dimension_numbers = #tpu.dot_dimension_numbers<[1], [0], [0], [1], [0, 0, 1, 1], [], []>} : vector<16x128xbf16>, vector<128x32xbf16>, vector<16x32xf32> -> vector<16x32xf32>
    %cst_37 = arith.constant 0.000000e+00 : f32
    %78 = vector.broadcast %cst_37 : f32 to vector<16x32xf32>
    %79 = arith.cmpf ogt, %77, %78 : vector<16x32xf32>
    %cst_38 = arith.constant 0.000000e+00 : f32
    %80 = vector.broadcast %cst_38 : f32 to vector<16x32xf32>
    %81 = arith.minimumf %77, %80 : vector<16x32xf32>
    %82 = math.exp %81 : vector<16x32xf32>
    %cst_39 = arith.constant 1.000000e+00 : f32
    %83 = vector.broadcast %cst_39 : f32 to vector<16x32xf32>
    %84 = arith.subf %82, %83 : vector<16x32xf32>
    %85 = arith.select %79, %77, %84 : vector<16x32xi1>, vector<16x32xf32>
    %86 = arith.truncf %85 : vector<16x32xf32> to vector<16x32xbf16>
    %c1 = arith.constant 1 : index
    %c0_40 = arith.constant 0 : index
    %c0_41 = arith.constant 0 : index
    %87 = vector.load %arg6[%c1, %c0_40, %c0_41] : memref<2x32x128xbf16, #tpu.memory_space<vmem>>, vector<1x32x128xbf16>
    %88 = vector.shape_cast %87 : vector<1x32x128xbf16> to vector<32x128xbf16>
    %cst_42 = arith.constant dense<0.000000e+00> : vector<16x128xf32>
    %89 = tpu.matmul %86, %88, %cst_42 {dimension_numbers = #tpu.dot_dimension_numbers<[1], [0], [0], [1], [0, 0, 1, 1], [], []>} : vector<16x32xbf16>, vector<32x128xbf16>, vector<16x128xf32> -> vector<16x128xf32>
    %90 = arith.truncf %89 : vector<16x128xf32> to vector<16x128xbf16>
    %c1_43 = arith.constant 1 : index
    %c0_44 = arith.constant 0 : index
    %c0_45 = arith.constant 0 : index
    %91 = vector.load %arg7[%c1_43, %c0_44, %c0_45] : memref<2x128x128xbf16, #tpu.memory_space<vmem>>, vector<1x128x128xbf16>
    %92 = vector.shape_cast %91 : vector<1x128x128xbf16> to vector<128x128xbf16>
    %cst_46 = arith.constant dense<0.000000e+00> : vector<16x128xf32>
    %93 = tpu.matmul %90, %92, %cst_46 {dimension_numbers = #tpu.dot_dimension_numbers<[1], [0], [0], [1], [0, 0, 1, 1], [], []>} : vector<16x128xbf16>, vector<128x128xbf16>, vector<16x128xf32> -> vector<16x128xf32>
    %94 = arith.truncf %93 : vector<16x128xf32> to vector<16x128xbf16>
    %c1_47 = arith.constant 1 : index
    %c0_48 = arith.constant 0 : index
    %c0_49 = arith.constant 0 : index
    %95 = vector.load %arg8[%c1_47, %c0_48, %c0_49] : memref<2x128x128xbf16, #tpu.memory_space<vmem>>, vector<1x128x128xbf16>
    %96 = vector.shape_cast %95 : vector<1x128x128xbf16> to vector<128x128xbf16>
    %cst_50 = arith.constant dense<0.000000e+00> : vector<16x128xf32>
    %97 = tpu.matmul %90, %96, %cst_50 {dimension_numbers = #tpu.dot_dimension_numbers<[1], [0], [0], [1], [0, 0, 1, 1], [], []>} : vector<16x128xbf16>, vector<128x128xbf16>, vector<16x128xf32> -> vector<16x128xf32>
    %98 = arith.truncf %97 : vector<16x128xf32> to vector<16x128xbf16>
    %cst_51 = arith.constant 0.000000e+00 : bf16
    %99 = vector.broadcast %cst_51 : bf16 to vector<16x128xbf16>
    %100 = tpu.concatenate %94, %99 in 1 : vector<16x128xbf16>, vector<16x128xbf16> -> vector<16x256xbf16>
    %101 = tpu.concatenate %98, %90 in 1 : vector<16x128xbf16>, vector<16x128xbf16> -> vector<16x256xbf16>
    %102 = tpu.concatenate %100, %101 in 0 : vector<16x256xbf16>, vector<16x256xbf16> -> vector<32x256xbf16>
    %cst_52 = arith.constant dense<0.000000e+00> : vector<64x256xf32>
    %103 = tpu.matmul %13, %102, %cst_52 {dimension_numbers = #tpu.dot_dimension_numbers<[1], [0], [0], [1], [0, 0, 1, 1], [], []>} : vector<64x32xbf16>, vector<32x256xbf16>, vector<64x256xf32> -> vector<64x256xf32>
    %104 = vector.extract_strided_slice %103 {offsets = [0, 0], sizes = [64, 128], strides = [1, 1]} : vector<64x256xf32> to vector<64x128xf32>
    %105 = vector.extract_strided_slice %103 {offsets = [0, 128], sizes = [64, 128], strides = [1, 1]} : vector<64x256xf32> to vector<64x128xf32>
    %cst_53 = arith.constant 0.000000e+00 : f32
    %106 = vector.broadcast %cst_53 : f32 to vector<64x128xf32>
    %107 = arith.cmpf oge, %104, %106 : vector<64x128xf32>
    %cst_54 = arith.constant 0.00999999977 : f32
    %108 = vector.broadcast %cst_54 : f32 to vector<64x128xf32>
    %109 = arith.mulf %108, %104 : vector<64x128xf32>
    %110 = arith.select %107, %104, %109 : vector<64x128xi1>, vector<64x128xf32>
    %cst_55 = arith.constant dense<0xFF800000> : vector<128xf32>
    %111 = vector.multi_reduction <maximumf>, %110, %cst_55 [0] : vector<64x128xf32> to vector<128xf32>
    %112 = vector.shape_cast %111 : vector<128xf32> to vector<1x128xf32>
    %113 = vector.broadcast %112 : vector<1x128xf32> to vector<64x128xf32>
    %114 = arith.subf %110, %113 : vector<64x128xf32>
    %115 = math.exp %114 : vector<64x128xf32>
    %cst_56 = arith.constant dense<0.000000e+00> : vector<128xf32>
    %116 = vector.multi_reduction <add>, %115, %cst_56 [0] : vector<64x128xf32> to vector<128xf32>
    %117 = vector.shape_cast %116 : vector<128xf32> to vector<1x128xf32>
    %118 = tpu.reciprocal %117 {approx = true} : vector<1x128xf32> -> vector<1x128xf32>
    %119 = vector.broadcast %118 : vector<1x128xf32> to vector<64x128xf32>
    %120 = arith.mulf %115, %119 : vector<64x128xf32>
    %121 = arith.mulf %120, %105 : vector<64x128xf32>
    %122 = arith.truncf %121 : vector<64x128xf32> to vector<64x128xbf16>
    %cst_57 = arith.constant dense<0.000000e+00> : vector<16x128xf32>
    %123 = tpu.matmul %20, %122, %cst_57 {dimension_numbers = #tpu.dot_dimension_numbers<[1], [0], [0], [1], [0, 0, 1, 1], [], []>} : vector<16x64xbf16>, vector<64x128xbf16>, vector<16x128xf32> -> vector<16x128xf32>
    %124 = arith.truncf %123 : vector<16x128xf32> to vector<16x128xbf16>
    %c1_58 = arith.constant 1 : index
    %c0_59 = arith.constant 0 : index
    %c0_60 = arith.constant 0 : index
    %125 = vector.load %arg9[%c1_58, %c0_59, %c0_60] : memref<2x128x32xbf16, #tpu.memory_space<vmem>>, vector<1x128x32xbf16>
    %126 = vector.shape_cast %125 : vector<1x128x32xbf16> to vector<128x32xbf16>
    %cst_61 = arith.constant dense<0.000000e+00> : vector<16x32xf32>
    %127 = tpu.matmul %124, %126, %cst_61 {dimension_numbers = #tpu.dot_dimension_numbers<[1], [0], [0], [1], [0, 0, 1, 1], [], []>} : vector<16x128xbf16>, vector<128x32xbf16>, vector<16x32xf32> -> vector<16x32xf32>
    %cst_62 = arith.constant 0.000000e+00 : f32
    %128 = vector.broadcast %cst_62 : f32 to vector<16x32xf32>
    %129 = arith.cmpf ogt, %127, %128 : vector<16x32xf32>
    %cst_63 = arith.constant 0.000000e+00 : f32
    %130 = vector.broadcast %cst_63 : f32 to vector<16x32xf32>
    %131 = arith.minimumf %127, %130 : vector<16x32xf32>
    %132 = math.exp %131 : vector<16x32xf32>
    %cst_64 = arith.constant 1.000000e+00 : f32
    %133 = vector.broadcast %cst_64 : f32 to vector<16x32xf32>
    %134 = arith.subf %132, %133 : vector<16x32xf32>
    %135 = arith.select %129, %127, %134 : vector<16x32xi1>, vector<16x32xf32>
    %136 = arith.truncf %135 : vector<16x32xf32> to vector<16x32xbf16>
    %c0_65 = arith.constant 0 : index
    %c0_66 = arith.constant 0 : index
    %137 = vector.load %arg10[%c0_65, %c0_66] : memref<32x16xbf16, #tpu.memory_space<vmem>>, vector<32x16xbf16>
    %cst_67 = arith.constant dense<0.000000e+00> : vector<16x16xf32>
    %138 = tpu.matmul %136, %137, %cst_67 {dimension_numbers = #tpu.dot_dimension_numbers<[1], [0], [0], [1], [0, 0, 1, 1], [], []>} : vector<16x32xbf16>, vector<32x16xbf16>, vector<16x16xf32> -> vector<16x16xf32>
    %c0_68 = arith.constant 0 : index
    %c0_69 = arith.constant 0 : index
    %139 = vector.load %arg11[%c0_68, %c0_69] : memref<1x16xf32, #tpu.memory_space<vmem>>, vector<1x16xf32>
    %140 = vector.broadcast %139 : vector<1x16xf32> to vector<16x16xf32>
    %141 = arith.addf %138, %140 : vector<16x16xf32>
    %cst_70 = arith.constant 0.000000e+00 : f32
    %142 = vector.broadcast %cst_70 : f32 to vector<16x16xf32>
    %143 = arith.maximumf %141, %142 : vector<16x16xf32>
    %144 = arith.truncf %143 : vector<16x16xf32> to vector<16x16xbf16>
    %c0_71 = arith.constant 0 : index
    %c0_72 = arith.constant 0 : index
    %145 = vector.load %arg12[%c0_71, %c0_72] : memref<16x128xbf16, #tpu.memory_space<vmem>>, vector<16x128xbf16>
    %cst_73 = arith.constant dense<0.000000e+00> : vector<16x128xf32>
    %146 = tpu.matmul %144, %145, %cst_73 {dimension_numbers = #tpu.dot_dimension_numbers<[1], [0], [0], [1], [0, 0, 1, 1], [], []>} : vector<16x16xbf16>, vector<16x128xbf16>, vector<16x128xf32> -> vector<16x128xf32>
    %c0_74 = arith.constant 0 : index
    %c0_75 = arith.constant 0 : index
    %147 = vector.load %arg13[%c0_74, %c0_75] : memref<1x128xf32, #tpu.memory_space<vmem>>, vector<1x128xf32>
    %148 = vector.broadcast %147 : vector<1x128xf32> to vector<16x128xf32>
    %149 = arith.addf %146, %148 : vector<16x128xf32>
    %c0_76 = arith.constant 0 : index
    %c0_77 = arith.constant 0 : index
    %150 = vector.load %arg14[%c0_76, %c0_77] : memref<16x128xf32, #tpu.memory_space<vmem>>, vector<16x128xf32>
    tpu.vector_store %arg14[%c0_76, %c0_77], %149 {strides = array<i32>} : memref<16x128xf32, #tpu.memory_space<vmem>>, vector<16x128xf32>,
    return
  }
}

</mosaic_0001>

<llo_original>
// kernel: meta_gat_forward.1
$region0: #{meta_gat_forward.1}
  #allocation0 [shape = 'u32[]', space=smem, size = 0x4, offset = 0x4, fixed_abs, tag = 'smem constant byte address 0x4 - core index']
  #allocation1 [shape = 'u32[144,128]{1,0:T(1,128)}', space=vmem, size = 0x12000, scoped, tag = 'internal scratch']
  %s0 = inlined_call_operand.vmem [shape: s32[64,1], index: 0, kind: input, shape index: {}]
  %s1 = inlined_call_operand.vmem [shape: s32[64,1], index: 1, kind: input, shape index: {}]
  %s2 = inlined_call_operand.vmem [shape: s32[1,64], index: 2, kind: input, shape index: {}]
  %s3 = inlined_call_operand.vmem [shape: f32[16,8], index: 3, kind: input, shape index: {}]
  %s4 = inlined_call_operand.vmem [shape: bf16[8,32], index: 4, kind: input, shape index: {}]
  %s5 = inlined_call_operand.vmem [shape: f32[1,32], index: 5, kind: input, shape index: {}]
  %s6 = inlined_call_operand.vmem [shape: bf16[2,32,128], index: 6, kind: input, shape index: {}]
  %s7 = inlined_call_operand.vmem [shape: bf16[2,128,128], index: 7, kind: input, shape index: {}]
  %s8 = inlined_call_operand.vmem [shape: bf16[2,128,128], index: 8, kind: input, shape index: {}]
  %s9 = inlined_call_operand.vmem [shape: bf16[2,128,32], index: 9, kind: input, shape index: {}]
  %s10 = inlined_call_operand.vmem [shape: bf16[32,16], index: 10, kind: input, shape index: {}]
  %s11 = inlined_call_operand.vmem [shape: f32[1,16], index: 11, kind: input, shape index: {}]
  %s12 = inlined_call_operand.vmem [shape: bf16[16,128], index: 12, kind: input, shape index: {}]
  %s13 = inlined_call_operand.vmem [shape: f32[1,128], index: 13, kind: input, shape index: {}]
  %s14 = inlined_call_operand.vmem [shape: f32[16,128], index: 14, kind: output, shape index: {}]
  %s15 = sld [smem:[#allocation0]]
  $region66: #{meta_gat_forward.1} parent=0
    _
  %s17 = ssub.s32 1, %s15
  %s18 = scalar_select 0, %s17, %s15
  // Predicated region
  $region2: #{meta_gat_forward.1} parent=0 // pred_check
    _
  $region3: #{meta_gat_forward.1} parent=0 // pred_check_branch
    %20 = sbr.rel (0) target = $region5
  $region4: #{meta_gat_forward.1} parent=0 // pred_region
    _
  $region5: #{meta_gat_forward.1} parent=0 // pred_fallthru
    _
  // Predicated region
  $region6: #{meta_gat_forward.1} parent=0 // pred_check
    _
  $region7: #{meta_gat_forward.1} parent=0 // pred_check_branch
    %22 = sbr.rel (0) target = $region9
  $region8: #{meta_gat_forward.1} parent=0 // pred_region
    _
  $region9: #{meta_gat_forward.1} parent=0 // pred_fallthru
    _
  // Predicated region
  $region10: #{meta_gat_forward.1} parent=0 // pred_check
    _
  $region11: #{meta_gat_forward.1} parent=0 // pred_check_branch
    %24 = sbr.rel (0) target = $region13
  $region12: #{meta_gat_forward.1} parent=0 // pred_region
    _
  $region13: #{meta_gat_forward.1} parent=0 // pred_fallthru
    _
  // Predicated region
  $region14: #{meta_gat_forward.1} parent=0 // pred_check
    _
  $region15: #{meta_gat_forward.1} parent=0 // pred_check_branch
    %26 = sbr.rel (0) target = $region17
  $region16: #{meta_gat_forward.1} parent=0 // pred_region
    _
  $region17: #{meta_gat_forward.1} parent=0 // pred_fallthru
    _
  // Predicated region
  $region18: #{meta_gat_forward.1} parent=0 // pred_check
    _
  $region19: #{meta_gat_forward.1} parent=0 // pred_check_branch
    %28 = sbr.rel (0) target = $region21
  $region20: #{meta_gat_forward.1} parent=0 // pred_region
    _
  $region21: #{meta_gat_forward.1} parent=0 // pred_fallthru
    _
  // Predicated region
  $region22: #{meta_gat_forward.1} parent=0 // pred_check
    _
  $region23: #{meta_gat_forward.1} parent=0 // pred_check_branch
    %30 = sbr.rel (0) target = $region25
  $region24: #{meta_gat_forward.1} parent=0 // pred_region
    _
  $region25: #{meta_gat_forward.1} parent=0 // pred_fallthru
    _
  // Predicated region
  $region26: #{meta_gat_forward.1} parent=0 // pred_check
    _
  $region27: #{meta_gat_forward.1} parent=0 // pred_check_branch
    %32 = sbr.rel (0) target = $region29
  $region28: #{meta_gat_forward.1} parent=0 // pred_region
    _
  $region29: #{meta_gat_forward.1} parent=0 // pred_fallthru
    _
  // Predicated region
  $region30: #{meta_gat_forward.1} parent=0 // pred_check
    _
  $region31: #{meta_gat_forward.1} parent=0 // pred_check_branch
    %34 = sbr.rel (0) target = $region33
  $region32: #{meta_gat_forward.1} parent=0 // pred_region
    _
  $region33: #{meta_gat_forward.1} parent=0 // pred_fallthru
    _
  // Predicated region
  $region34: #{meta_gat_forward.1} parent=0 // pred_check
    _
  $region35: #{meta_gat_forward.1} parent=0 // pred_check_branch
    %36 = sbr.rel (0) target = $region37
  $region36: #{meta_gat_forward.1} parent=0 // pred_region
    _
  $region37: #{meta_gat_forward.1} parent=0 // pred_fallthru
    _
  // Predicated region
  $region38: #{meta_gat_forward.1} parent=0 // pred_check
    _
  $region39: #{meta_gat_forward.1} parent=0 // pred_check_branch
    %38 = sbr.rel (0) target = $region41
  $region40: #{meta_gat_forward.1} parent=0 // pred_region
    _
  $region41: #{meta_gat_forward.1} parent=0 // pred_fallthru
    _
  // Predicated region
  $region42: #{meta_gat_forward.1} parent=0 // pred_check
    _
  $region43: #{meta_gat_forward.1} parent=0 // pred_check_branch
    %40 = sbr.rel (0) target = $region45
  $region44: #{meta_gat_forward.1} parent=0 // pred_region
    _
  $region45: #{meta_gat_forward.1} parent=0 // pred_fallthru
    _
  // Predicated region
  $region46: #{meta_gat_forward.1} parent=0 // pred_check
    _
  $region47: #{meta_gat_forward.1} parent=0 // pred_check_branch
    %42 = sbr.rel (0) target = $region49
  $region48: #{meta_gat_forward.1} parent=0 // pred_region
    _
  $region49: #{meta_gat_forward.1} parent=0 // pred_fallthru
    _
  // Predicated region
  $region50: #{meta_gat_forward.1} parent=0 // pred_check
    _
  $region51: #{meta_gat_forward.1} parent=0 // pred_check_branch
    %44 = sbr.rel (0) target = $region53
  $region52: #{meta_gat_forward.1} parent=0 // pred_region
    _
  $region53: #{meta_gat_forward.1} parent=0 // pred_fallthru
    _
  // Predicated region
  $region54: #{meta_gat_forward.1} parent=0 // pred_check
    _
  $region55: #{meta_gat_forward.1} parent=0 // pred_check_branch
    %46 = sbr.rel (0) target = $region57
  $region56: #{meta_gat_forward.1} parent=0 // pred_region
    _
  $region57: #{meta_gat_forward.1} parent=0 // pred_fallthru
    _
  %v48 = vlaneseq
  %v49 = vand.u32 %v48, 127
  %v50 = vld [vmem:[%s0] sm:$0xff]
  %v51 = vld [vmem:[%s0 + $0x8] sm:$0xff]
  %v52 = vld [vmem:[%s0 + $0x10] sm:$0xff]
  %v53 = vld [vmem:[%s0 + $0x18] sm:$0xff]
  %v54 = vld [vmem:[%s0 + $0x20] sm:$0xff]
  %v55 = vld [vmem:[%s0 + $0x28] sm:$0xff]
  %v56 = vld [vmem:[%s0 + $0x30] sm:$0xff]
  %v57 = vld [vmem:[%s0 + $0x38] sm:$0xff]
  %58 = vset.pattern.permute.xlu0 0
  %59 = vperm.xlu0 %58, %v50
  %v60 = vpop.permute.xlu0 %59
  %61 = vset.pattern.permute.xlu0 0
  %62 = vperm.xlu0 %61, %v51
  %v63 = vpop.permute.xlu0 %62
  %64 = vset.pattern.permute.xlu0 0
  %65 = vperm.xlu0 %64, %v52
  %v66 = vpop.permute.xlu0 %65
  %67 = vset.pattern.permute.xlu0 0
  %68 = vperm.xlu0 %67, %v53
  %v69 = vpop.permute.xlu0 %68
  %70 = vset.pattern.permute.xlu0 0
  %71 = vperm.xlu0 %70, %v54
  %v72 = vpop.permute.xlu0 %71
  %73 = vset.pattern.permute.xlu0 0
  %74 = vperm.xlu0 %73, %v55
  %v75 = vpop.permute.xlu0 %74
  %76 = vset.pattern.permute.xlu0 0
  %77 = vperm.xlu0 %76, %v56
  %v78 = vpop.permute.xlu0 %77
  %79 = vset.pattern.permute.xlu0 0
  %80 = vperm.xlu0 %79, %v57
  %v81 = vpop.permute.xlu0 %80
  %vm82 = vcmp.eq.s32.totalorder %v60, %v49
  %vm83 = vcmp.eq.s32.totalorder %v63, %v49
  %vm84 = vcmp.eq.s32.totalorder %v66, %v49
  %vm85 = vcmp.eq.s32.totalorder %v69, %v49
  %vm86 = vcmp.eq.s32.totalorder %v72, %v49
  %vm87 = vcmp.eq.s32.totalorder %v75, %v49
  %vm88 = vcmp.eq.s32.totalorder %v78, %v49
  %vm89 = vcmp.eq.s32.totalorder %v81, %v49
  %v90 = vsel %vm82, 1, 0
  %v91 = vsel %vm83, 1, 0
  %v92 = vsel %vm84, 1, 0
  %v93 = vsel %vm85, 1, 0
  %v94 = vsel %vm86, 1, 0
  %v95 = vsel %vm87, 1, 0
  %v96 = vsel %vm88, 1, 0
  %v97 = vsel %vm89, 1, 0
  %v98 = vcvt.s32.f32 %v90
  %v99 = vcvt.s32.f32 %v91
  %v100 = vcvt.s32.f32 %v92
  %v101 = vcvt.s32.f32 %v93
  %v102 = vcvt.s32.f32 %v94
  %v103 = vcvt.s32.f32 %v95
  %v104 = vcvt.s32.f32 %v96
  %v105 = vcvt.s32.f32 %v97
  %v106 = vpack.c.bf16 %v99, %v98
  %v107 = vpack.c.bf16 %v101, %v100
  %v108 = vpack.c.bf16 %v103, %v102
  %v109 = vpack.c.bf16 %v105, %v104
  %v110 = vld [vmem:[%s1] sm:$0xff]
  %v111 = vld [vmem:[%s1 + $0x8] sm:$0xff]
  %v112 = vld [vmem:[%s1 + $0x10] sm:$0xff]
  %v113 = vld [vmem:[%s1 + $0x18] sm:$0xff]
  %v114 = vld [vmem:[%s1 + $0x20] sm:$0xff]
  %v115 = vld [vmem:[%s1 + $0x28] sm:$0xff]
  %v116 = vld [vmem:[%s1 + $0x30] sm:$0xff]
  %v117 = vld [vmem:[%s1 + $0x38] sm:$0xff]
  %118 = vset.pattern.permute.xlu0 0
  %119 = vperm.xlu0 %118, %v110
  %v120 = vpop.permute.xlu0 %119
  %121 = vset.pattern.permute.xlu0 0
  %122 = vperm.xlu0 %121, %v111
  %v123 = vpop.permute.xlu0 %122
  %124 = vset.pattern.permute.xlu0 0
  %125 = vperm.xlu0 %124, %v112
  %v126 = vpop.permute.xlu0 %125
  %127 = vset.pattern.permute.xlu0 0
  %128 = vperm.xlu0 %127, %v113
  %v129 = vpop.permute.xlu0 %128
  %130 = vset.pattern.permute.xlu0 0
  %131 = vperm.xlu0 %130, %v114
  %v132 = vpop.permute.xlu0 %131
  %133 = vset.pattern.permute.xlu0 0
  %134 = vperm.xlu0 %133, %v115
  %v135 = vpop.permute.xlu0 %134
  %136 = vset.pattern.permute.xlu0 0
  %137 = vperm.xlu0 %136, %v116
  %v138 = vpop.permute.xlu0 %137
  %139 = vset.pattern.permute.xlu0 0
  %140 = vperm.xlu0 %139, %v117
  %v141 = vpop.permute.xlu0 %140
  %vm142 = vcmp.eq.s32.totalorder %v120, %v49
  %vm143 = vcmp.eq.s32.totalorder %v123, %v49
  %vm144 = vcmp.eq.s32.totalorder %v126, %v49
  %vm145 = vcmp.eq.s32.totalorder %v129, %v49
  %vm146 = vcmp.eq.s32.totalorder %v132, %v49
  %vm147 = vcmp.eq.s32.totalorder %v135, %v49
  %vm148 = vcmp.eq.s32.totalorder %v138, %v49
  %vm149 = vcmp.eq.s32.totalorder %v141, %v49
  %v150 = vsel %vm142, 1, 0
  %v151 = vsel %vm143, 1, 0
  %v152 = vsel %vm144, 1, 0
  %v153 = vsel %vm145, 1, 0
  %v154 = vsel %vm146, 1, 0
  %v155 = vsel %vm147, 1, 0
  %v156 = vsel %vm148, 1, 0
  %v157 = vsel %vm149, 1, 0
  %v158 = vcvt.s32.f32 %v150
  %v159 = vcvt.s32.f32 %v151
  %v160 = vcvt.s32.f32 %v152
  %v161 = vcvt.s32.f32 %v153
  %v162 = vcvt.s32.f32 %v154
  %v163 = vcvt.s32.f32 %v155
  %v164 = vcvt.s32.f32 %v156
  %v165 = vcvt.s32.f32 %v157
  %v166 = vpack.c.bf16 %v159, %v158
  %v167 = vpack.c.bf16 %v161, %v160
  %v168 = vpack.c.bf16 %v163, %v162
  %v169 = vpack.c.bf16 %v165, %v164
  %174 = vrot.lane.b32.xlu0 %v166, 16
  %v175 = vpop.permute.xlu0 %174
  %176 = vrot.lane.b32.xlu0 %v167, 16
  %v177 = vpop.permute.xlu0 %176
  %178 = vrot.lane.b32.xlu0 %v168, 16
  %v179 = vpop.permute.xlu0 %178
  %180 = vrot.lane.b32.xlu0 %v169, 16
  %v181 = vpop.permute.xlu0 %180
  %vm182 = vcmask 130048
  %v185 = vsel %vm182, %v106, %v175
  %v188 = vsel %vm182, %v107, %v177
  %v191 = vsel %vm182, %v108, %v179
  %v194 = vsel %vm182, %v109, %v181
  %v195 = vlaneseq
  %v196 = vshrl.u32 %v195, 7
  %v197 = vadd.s32 %v196, 8
  %v198 = vld [vmem:[%s2] sm:$0x1]
  %v199 = vlaneseq
  %v200 = vshrl.u32 %v199, 7
  %v201 = vsub.s32 0, %v200
  %v202 = vrot.slane %v198, %v201
  %vm203 = vcmp.eq.s32.totalorder %v202, %v196
  %vm204 = vcmp.eq.s32.totalorder %v202, %v197
  %v205 = vsel %vm203, 1, 0
  %v206 = vsel %vm204, 1, 0
  %v207 = vcvt.s32.f32 %v205
  %v208 = vcvt.s32.f32 %v206
  %v209 = vpack.c.bf16 %v208, %v207
  %v210 = vld [vmem:[%s3] sm:$0xff]
  %v211 = vld [vmem:[%s3 + $0x8] sm:$0xff]
  %v212 = vpack.c.bf16 %v211, %v210
  %v213 = vld [vmem:[%s4] sm:$0xf]
  %v214 = vld [vmem:[%s5] sm:$0x1]
  %v216 = vlaneseq
  %v217 = vshrl.u32 %v216, 7
  %v218 = vsub.s32 0, %v217
  %v219 = vrot.slane %v214, %v218
  %vm221 = vcmask 64512
  %v223 = vsel %vm221, %v212, 0
  %vm225 = vcmask 1043456
  %v227 = vsel %vm225, %v213, 0
  %229 = vmatprep.subr.bf16.mxu0 0
  %230 = vmatpush1.bf16.msra.mxu0 %v227
  %231 = vmatprep.subr.bf16.mxu0 0
  %232 = vmatpush1.bf16.msra.mxu0 0
  %233 = vmatprep.subr.bf16.mxu0 0
  %234 = vmatpush1.bf16.msra.mxu0 0
  %235 = vmatprep.subr.bf16.mxu0 0
  %236 = vmatpush1.bf16.msra.mxu0 0
  %237 = vmatprep.subr.bf16.mxu0 0
  %238 = vmatpush1.bf16.msra.mxu0 0
  %239 = vmatprep.subr.bf16.mxu0 0
  %240 = vmatpush1.bf16.msra.mxu0 0
  %241 = vmatprep.subr.bf16.mxu0 0
  %242 = vmatpush1.bf16.msra.mxu0 0
  %243 = vmatprep.subr.bf16.mxu0 0
  %244 = vmatpush1.bf16.msra.mxu0 0
  %245 = vmatprep.subr.bf16.mxu0 0
  %246 = vmatpush1.bf16.msra.mxu0 0
  %247 = vmatprep.subr.bf16.mxu0 0
  %248 = vmatpush1.bf16.msra.mxu0 0
  %249 = vmatprep.subr.bf16.mxu0 0
  %250 = vmatpush1.bf16.msra.mxu0 0
  %251 = vmatprep.subr.bf16.mxu0 0
  %252 = vmatpush1.bf16.msra.mxu0 0
  %253 = vmatprep.subr.bf16.mxu0 0
  %254 = vmatpush1.bf16.msra.mxu0 0
  %255 = vmatprep.subr.bf16.mxu0 0
  %256 = vmatpush1.bf16.msra.mxu0 0
  %257 = vmatprep.subr.bf16.mxu0 0
  %258 = vmatpush1.bf16.msra.mxu0 0
  %259 = vmatprep.subr.bf16.mxu0 0
  %260 = vmatpush1.bf16.msra.mxu0 0
  %261 = vmatprep.mubr.bf16.mxu0 0
  %262 = vmatmul.mubr.bf16.gmra.mrb[0].mxu0 %v223
  %v263 = vpop.f32.mrb[0].mxu0
  %v264 = vadd.f32 %v219, %v263
  %v265 = vpop.f32.mrb[0].mxu0
  %v266 = vpop.f32.mrb[0].mxu0
  %v267 = vadd.f32 %v219, %v266
  %v268 = vpop.f32.mrb[0].mxu0
  %269 = vdwg.mxu0
  %vm270 = vcmp.gt.f32.partialorder %v264, 0.0
  %vm271 = vcmp.gt.f32.partialorder %v267, 0.0
  %v272 = vmin.f32 %v264, 0.0
  %v273 = vmin.f32 %v267, 0.0
  %v274 = vmul.f32 %v272, 1.442695
  %v275 = vpow.pop %v274
  %v276 = vmul.f32 %v273, 1.442695
  %v277 = vpow.pop %v276
  %v278 = vsub.f32 %v275, 1.0
  %v279 = vsub.f32 %v277, 1.0
  %v280 = vsel %vm270, %v264, %v278
  %v281 = vsel %vm271, %v267, %v279
  %v282 = vpack.c.bf16 %v281, %v280
  %v283 = vld [vmem:[%s6] sm:$0xf]
  %v284 = vld [vmem:[%s6 + $0x4] sm:$0xf]
  %v285 = vld [vmem:[%s6 + $0x8] sm:$0xf]
  %v286 = vld [vmem:[%s6 + $0xc] sm:$0xf]
  %v291 = vunpack.c.l.b16 %v283
  %v292 = vunpack.c.l.b16 %v284
  %v293 = vunpack.c.l.b16 %v285
  %v294 = vunpack.c.l.b16 %v286
  %v295 = vpack.c.b16 %v292, %v291
  %v296 = vpack.c.b16 %v294, %v293
  %vm299 = vcmask 261120
  %v301 = vsel %vm299, %v282, 0
  %303 = vmatprep.subr.bf16.mxu0 0
  %304 = vmatpush1.bf16.msra.mxu0 %v295
  %305 = vmatprep.subr.bf16.mxu0 0
  %306 = vmatpush1.bf16.msra.mxu0 %v296
  %307 = vmatprep.subr.bf16.mxu0 0
  %308 = vmatpush1.bf16.msra.mxu0 0
  %309 = vmatprep.subr.bf16.mxu0 0
  %310 = vmatpush1.bf16.msra.mxu0 0
  %311 = vmatprep.subr.bf16.mxu0 0
  %312 = vmatpush1.bf16.msra.mxu0 0
  %313 = vmatprep.subr.bf16.mxu0 0
  %314 = vmatpush1.bf16.msra.mxu0 0
  %315 = vmatprep.subr.bf16.mxu0 0
  %316 = vmatpush1.bf16.msra.mxu0 0
  %317 = vmatprep.subr.bf16.mxu0 0
  %318 = vmatpush1.bf16.msra.mxu0 0
  %319 = vmatprep.subr.bf16.mxu0 0
  %320 = vmatpush1.bf16.msra.mxu0 0
  %321 = vmatprep.subr.bf16.mxu0 0
  %322 = vmatpush1.bf16.msra.mxu0 0
  %323 = vmatprep.subr.bf16.mxu0 0
  %324 = vmatpush1.bf16.msra.mxu0 0
  %325 = vmatprep.subr.bf16.mxu0 0
  %326 = vmatpush1.bf16.msra.mxu0 0
  %327 = vmatprep.subr.bf16.mxu0 0
  %328 = vmatpush1.bf16.msra.mxu0 0
  %329 = vmatprep.subr.bf16.mxu0 0
  %330 = vmatpush1.bf16.msra.mxu0 0
  %331 = vmatprep.subr.bf16.mxu0 0
  %332 = vmatpush1.bf16.msra.mxu0 0
  %333 = vmatprep.subr.bf16.mxu0 0
  %334 = vmatpush1.bf16.msra.mxu0 0
  %335 = vmatprep.mubr.bf16.mxu0 0
  %336 = vmatmul.mubr.bf16.gmra.mrb[0].mxu0 %v301
  %v337 = vpop.f32.mrb[0].mxu0
  %v338 = vadd.f32 0.0, %v337
  %v339 = vpop.f32.mrb[0].mxu0
  %v340 = vpop.f32.mrb[0].mxu0
  %v341 = vadd.f32 0.0, %v340
  %v342 = vpop.f32.mrb[0].mxu0
  %343 = vdwg.mxu0
  %v344 = vpack.c.bf16 %v341, %v338
  %v345 = vld [vmem:[%s7] sm:$0xf]
  %v346 = vld [vmem:[%s7 + $0x4] sm:$0xf]
  %v347 = vld [vmem:[%s7 + $0x8] sm:$0xf]
  %v348 = vld [vmem:[%s7 + $0xc] sm:$0xf]
  %v349 = vld [vmem:[%s7 + $0x10] sm:$0xf]
  %v350 = vld [vmem:[%s7 + $0x14] sm:$0xf]
  %v351 = vld [vmem:[%s7 + $0x18] sm:$0xf]
  %v352 = vld [vmem:[%s7 + $0x1c] sm:$0xf]
  %v353 = vld [vmem:[%s7 + $0x20] sm:$0xf]
  %v354 = vld [vmem:[%s7 + $0x24] sm:$0xf]
  %v355 = vld [vmem:[%s7 + $0x28] sm:$0xf]
  %v356 = vld [vmem:[%s7 + $0x2c] sm:$0xf]
  %v357 = vld [vmem:[%s7 + $0x30] sm:$0xf]
  %v358 = vld [vmem:[%s7 + $0x34] sm:$0xf]
  %v359 = vld [vmem:[%s7 + $0x38] sm:$0xf]
  %v360 = vld [vmem:[%s7 + $0x3c] sm:$0xf]
  %v377 = vunpack.c.l.b16 %v345
  %v378 = vunpack.c.l.b16 %v346
  %v379 = vunpack.c.l.b16 %v347
  %v380 = vunpack.c.l.b16 %v348
  %v381 = vunpack.c.l.b16 %v349
  %v382 = vunpack.c.l.b16 %v350
  %v383 = vunpack.c.l.b16 %v351
  %v384 = vunpack.c.l.b16 %v352
  %v385 = vunpack.c.l.b16 %v353
  %v386 = vunpack.c.l.b16 %v354
  %v387 = vunpack.c.l.b16 %v355
  %v388 = vunpack.c.l.b16 %v356
  %v389 = vunpack.c.l.b16 %v357
  %v390 = vunpack.c.l.b16 %v358
  %v391 = vunpack.c.l.b16 %v359
  %v392 = vunpack.c.l.b16 %v360
  %v393 = vpack.c.b16 %v378, %v377
  %v394 = vpack.c.b16 %v380, %v379
  %v395 = vpack.c.b16 %v382, %v381
  %v396 = vpack.c.b16 %v384, %v383
  %v397 = vpack.c.b16 %v386, %v385
  %v398 = vpack.c.b16 %v388, %v387
  %v399 = vpack.c.b16 %v390, %v389
  %v400 = vpack.c.b16 %v392, %v391
  %409 = vmatprep.subr.bf16.mxu0 0
  %410 = vmatpush1.bf16.msra.mxu0 %v393
  %411 = vmatprep.subr.bf16.mxu0 0
  %412 = vmatpush1.bf16.msra.mxu0 %v394
  %413 = vmatprep.subr.bf16.mxu0 0
  %414 = vmatpush1.bf16.msra.mxu0 %v395
  %415 = vmatprep.subr.bf16.mxu0 0
  %416 = vmatpush1.bf16.msra.mxu0 %v396
  %417 = vmatprep.subr.bf16.mxu0 0
  %418 = vmatpush1.bf16.msra.mxu0 %v397
  %419 = vmatprep.subr.bf16.mxu0 0
  %420 = vmatpush1.bf16.msra.mxu0 %v398
  %421 = vmatprep.subr.bf16.mxu0 0
  %422 = vmatpush1.bf16.msra.mxu0 %v399
  %423 = vmatprep.subr.bf16.mxu0 0
  %424 = vmatpush1.bf16.msra.mxu0 %v400
  %425 = vmatprep.subr.bf16.mxu0 0
  %426 = vmatpush1.bf16.msra.mxu0 0
  %427 = vmatprep.subr.bf16.mxu0 0
  %428 = vmatpush1.bf16.msra.mxu0 0
  %429 = vmatprep.subr.bf16.mxu0 0
  %430 = vmatpush1.bf16.msra.mxu0 0
  %431 = vmatprep.subr.bf16.mxu0 0
  %432 = vmatpush1.bf16.msra.mxu0 0
  %433 = vmatprep.subr.bf16.mxu0 0
  %434 = vmatpush1.bf16.msra.mxu0 0
  %435 = vmatprep.subr.bf16.mxu0 0
  %436 = vmatpush1.bf16.msra.mxu0 0
  %437 = vmatprep.subr.bf16.mxu0 0
  %438 = vmatpush1.bf16.msra.mxu0 0
  %439 = vmatprep.subr.bf16.mxu0 0
  %440 = vmatpush1.bf16.msra.mxu0 0
  %441 = vmatprep.mubr.bf16.mxu0 0
  %442 = vmatmul.mubr.bf16.gmra.mrb[0].mxu0 %v344
  %v443 = vpop.f32.mrb[0].mxu0
  %v444 = vadd.f32 0.0, %v443
  %v445 = vpop.f32.mrb[0].mxu0
  %v446 = vpop.f32.mrb[0].mxu0
  %v447 = vadd.f32 0.0, %v446
  %v448 = vpop.f32.mrb[0].mxu0
  %449 = vdwg.mxu0
  %v450 = vpack.c.bf16 %v447, %v444
  %v451 = vld [vmem:[%s8] sm:$0xf]
  %v452 = vld [vmem:[%s8 + $0x4] sm:$0xf]
  %v453 = vld [vmem:[%s8 + $0x8] sm:$0xf]
  %v454 = vld [vmem:[%s8 + $0xc] sm:$0xf]
  %v455 = vld [vmem:[%s8 + $0x10] sm:$0xf]
  %v456 = vld [vmem:[%s8 + $0x14] sm:$0xf]
  %v457 = vld [vmem:[%s8 + $0x18] sm:$0xf]
  %v458 = vld [vmem:[%s8 + $0x1c] sm:$0xf]
  %v459 = vld [vmem:[%s8 + $0x20] sm:$0xf]
  %v460 = vld [vmem:[%s8 + $0x24] sm:$0xf]
  %v461 = vld [vmem:[%s8 + $0x28] sm:$0xf]
  %v462 = vld [vmem:[%s8 + $0x2c] sm:$0xf]
  %v463 = vld [vmem:[%s8 + $0x30] sm:$0xf]
  %v464 = vld [vmem:[%s8 + $0x34] sm:$0xf]
  %v465 = vld [vmem:[%s8 + $0x38] sm:$0xf]
  %v466 = vld [vmem:[%s8 + $0x3c] sm:$0xf]
  %v483 = vunpack.c.l.b16 %v451
  %v484 = vunpack.c.l.b16 %v452
  %v485 = vunpack.c.l.b16 %v453
  %v486 = vunpack.c.l.b16 %v454
  %v487 = vunpack.c.l.b16 %v455
  %v488 = vunpack.c.l.b16 %v456
  %v489 = vunpack.c.l.b16 %v457
  %v490 = vunpack.c.l.b16 %v458
  %v491 = vunpack.c.l.b16 %v459
  %v492 = vunpack.c.l.b16 %v460
  %v493 = vunpack.c.l.b16 %v461
  %v494 = vunpack.c.l.b16 %v462
  %v495 = vunpack.c.l.b16 %v463
  %v496 = vunpack.c.l.b16 %v464
  %v497 = vunpack.c.l.b16 %v465
  %v498 = vunpack.c.l.b16 %v466
  %v499 = vpack.c.b16 %v484, %v483
  %v500 = vpack.c.b16 %v486, %v485
  %v501 = vpack.c.b16 %v488, %v487
  %v502 = vpack.c.b16 %v490, %v489
  %v503 = vpack.c.b16 %v492, %v491
  %v504 = vpack.c.b16 %v494, %v493
  %v505 = vpack.c.b16 %v496, %v495
  %v506 = vpack.c.b16 %v498, %v497
  %515 = vmatprep.subr.bf16.mxu0 0
  %516 = vmatpush1.bf16.msra.mxu0 %v499
  %517 = vmatprep.subr.bf16.mxu0 0
  %518 = vmatpush1.bf16.msra.mxu0 %v500
  %519 = vmatprep.subr.bf16.mxu0 0
  %520 = vmatpush1.bf16.msra.mxu0 %v501
  %521 = vmatprep.subr.bf16.mxu0 0
  %522 = vmatpush1.bf16.msra.mxu0 %v502
  %523 = vmatprep.subr.bf16.mxu0 0
  %524 = vmatpush1.bf16.msra.mxu0 %v503
  %525 = vmatprep.subr.bf16.mxu0 0
  %526 = vmatpush1.bf16.msra.mxu0 %v504
  %527 = vmatprep.subr.bf16.mxu0 0
  %528 = vmatpush1.bf16.msra.mxu0 %v505
  %529 = vmatprep.subr.bf16.mxu0 0
  %530 = vmatpush1.bf16.msra.mxu0 %v506
  %531 = vmatprep.subr.bf16.mxu0 0
  %532 = vmatpush1.bf16.msra.mxu0 0
  %533 = vmatprep.subr.bf16.mxu0 0
  %534 = vmatpush1.bf16.msra.mxu0 0
  %535 = vmatprep.subr.bf16.mxu0 0
  %536 = vmatpush1.bf16.msra.mxu0 0
  %537 = vmatprep.subr.bf16.mxu0 0
  %538 = vmatpush1.bf16.msra.mxu0 0
  %539 = vmatprep.subr.bf16.mxu0 0
  %540 = vmatpush1.bf16.msra.mxu0 0
  %541 = vmatprep.subr.bf16.mxu0 0
  %542 = vmatpush1.bf16.msra.mxu0 0
  %543 = vmatprep.subr.bf16.mxu0 0
  %544 = vmatpush1.bf16.msra.mxu0 0
  %545 = vmatprep.subr.bf16.mxu0 0
  %546 = vmatpush1.bf16.msra.mxu0 0
  %547 = vmatprep.mubr.bf16.mxu0 0
  %548 = vmatmul.mubr.bf16.gmra.mrb[0].mxu0 %v344
  %v549 = vpop.f32.mrb[0].mxu0
  %v550 = vadd.f32 0.0, %v549
  %v551 = vpop.f32.mrb[0].mxu0
  %v552 = vpop.f32.mrb[0].mxu0
  %v553 = vadd.f32 0.0, %v552
  %v554 = vpop.f32.mrb[0].mxu0
  %555 = vdwg.mxu0
  %v556 = vpack.c.bf16 %v553, %v550
  %v557 = vsel %vm299, %v185, 0
  %v559 = vsel %vm299, %v188, 0
  %v561 = vsel %vm299, %v191, 0
  %v563 = vsel %vm299, %v194, 0
  %565 = vmatprep.subr.bf16.mxu0 0
  %566 = vmatpush1.bf16.msra.mxu0 %v450
  %567 = vmatprep.subr.bf16.mxu0 %v344
  %568 = vmatpush1.bf16.msra.mxu0 %v556
  %569 = vmatprep.subr.bf16.mxu0 0
  %570 = vmatpush1.bf16.msra.mxu0 0
  %571 = vmatprep.subr.bf16.mxu0 0
  %572 = vmatpush1.bf16.msra.mxu0 0
  %573 = vmatprep.subr.bf16.mxu0 0
  %574 = vmatpush1.bf16.msra.mxu0 0
  %575 = vmatprep.subr.bf16.mxu0 0
  %576 = vmatpush1.bf16.msra.mxu0 0
  %577 = vmatprep.subr.bf16.mxu0 0
  %578 = vmatpush1.bf16.msra.mxu0 0
  %579 = vmatprep.subr.bf16.mxu0 0
  %580 = vmatpush1.bf16.msra.mxu0 0
  %581 = vmatprep.subr.bf16.mxu0 0
  %582 = vmatpush1.bf16.msra.mxu0 0
  %583 = vmatprep.subr.bf16.mxu0 0
  %584 = vmatpush1.bf16.msra.mxu0 0
  %585 = vmatprep.subr.bf16.mxu0 0
  %586 = vmatpush1.bf16.msra.mxu0 0
  %587 = vmatprep.subr.bf16.mxu0 0
  %588 = vmatpush1.bf16.msra.mxu0 0
  %589 = vmatprep.subr.bf16.mxu0 0
  %590 = vmatpush1.bf16.msra.mxu0 0
  %591 = vmatprep.subr.bf16.mxu0 0
  %592 = vmatpush1.bf16.msra.mxu0 0
  %593 = vmatprep.subr.bf16.mxu0 0
  %594 = vmatpush1.bf16.msra.mxu0 0
  %595 = vmatprep.subr.bf16.mxu0 0
  %596 = vmatpush1.bf16.msra.mxu0 0
  %597 = vmatprep.mubr.bf16.mxu0 0
  %598 = vmatmul.mubr.bf16.gmra.mrb[0].mxu0 %v557
  %v599 = vpop.f32.mrb[0].mxu0
  %v600 = vadd.f32 0.0, %v599
  %v601 = vpop.f32.mrb[0].mxu0
  %v602 = vadd.f32 0.0, %v601
  %v603 = vpop.f32.mrb[0].mxu0
  %v604 = vadd.f32 0.0, %v603
  %v605 = vpop.f32.mrb[0].mxu0
  %v606 = vadd.f32 0.0, %v605
  %607 = vmatprep.mubr.bf16.mxu0 0
  %608 = vmatmul.mubr.bf16.gmra.mrb[0].mxu0 %v559
  %v609 = vpop.f32.mrb[0].mxu0
  %v610 = vadd.f32 0.0, %v609
  %v611 = vpop.f32.mrb[0].mxu0
  %v612 = vadd.f32 0.0, %v611
  %v613 = vpop.f32.mrb[0].mxu0
  %v614 = vadd.f32 0.0, %v613
  %v615 = vpop.f32.mrb[0].mxu0
  %v616 = vadd.f32 0.0, %v615
  %617 = vmatprep.mubr.bf16.mxu0 0
  %618 = vmatmul.mubr.bf16.gmra.mrb[0].mxu0 %v561
  %v619 = vpop.f32.mrb[0].mxu0
  %v620 = vadd.f32 0.0, %v619
  %v621 = vpop.f32.mrb[0].mxu0
  %v622 = vadd.f32 0.0, %v621
  %v623 = vpop.f32.mrb[0].mxu0
  %v624 = vadd.f32 0.0, %v623
  %v625 = vpop.f32.mrb[0].mxu0
  %v626 = vadd.f32 0.0, %v625
  %627 = vmatprep.mubr.bf16.mxu0 0
  %628 = vmatmul.mubr.bf16.gmra.mrb[0].mxu0 %v563
  %v629 = vpop.f32.mrb[0].mxu0
  %v630 = vadd.f32 0.0, %v629
  %v631 = vpop.f32.mrb[0].mxu0
  %v632 = vadd.f32 0.0, %v631
  %v633 = vpop.f32.mrb[0].mxu0
  %v634 = vadd.f32 0.0, %v633
  %v635 = vpop.f32.mrb[0].mxu0
  %v636 = vadd.f32 0.0, %v635
  %637 = vdwg.mxu0
  %vm638 = vcmp.ge.f32.partialorder %v600, 0.0
  %vm639 = vcmp.ge.f32.partialorder %v604, 0.0
  %vm640 = vcmp.ge.f32.partialorder %v610, 0.0
  %vm641 = vcmp.ge.f32.partialorder %v614, 0.0
  %vm642 = vcmp.ge.f32.partialorder %v620, 0.0
  %vm643 = vcmp.ge.f32.partialorder %v624, 0.0
  %vm644 = vcmp.ge.f32.partialorder %v630, 0.0
  %vm645 = vcmp.ge.f32.partialorder %v634, 0.0
  %v646 = vmul.f32 %v600, 0.01
  %v647 = vmul.f32 %v604, 0.01
  %v648 = vmul.f32 %v610, 0.01
  %v649 = vmul.f32 %v614, 0.01
  %v650 = vmul.f32 %v620, 0.01
  %v651 = vmul.f32 %v624, 0.01
  %v652 = vmul.f32 %v630, 0.01
  %v653 = vmul.f32 %v634, 0.01
  %v654 = vsel %vm638, %v600, %v646
  %v655 = vsel %vm639, %v604, %v647
  %v656 = vsel %vm640, %v610, %v648
  %v657 = vsel %vm641, %v614, %v649
  %v658 = vsel %vm642, %v620, %v650
  %v659 = vsel %vm643, %v624, %v651
  %v660 = vsel %vm644, %v630, %v652
  %v661 = vsel %vm645, %v634, %v653
  %v662 = vmax.f32 %v654, %v658
  %v663 = vmax.f32 %v655, %v659
  %v664 = vmax.f32 %v656, %v660
  %v665 = vmax.f32 %v657, %v661
  %v666 = vmax.f32 %v662, %v663
  %v667 = vmax.f32 %v664, %v665
  %v668 = vmax.f32 %v666, %v667
  %v669 = vrot.slane %v668, 4
  %v670 = vmax.f32 %v668, %v669
  %v671 = vrot.slane %v670, 2
  %v672 = vmax.f32 %v670, %v671
  %v673 = vrot.slane %v672, 1
  %v674 = vmax.f32 %v672, %v673
  %v675 = vsub.f32 %v654, %v674
  %v676 = vsub.f32 %v655, %v674
  %v677 = vsub.f32 %v656, %v674
  %v678 = vsub.f32 %v657, %v674
  %v679 = vsub.f32 %v658, %v674
  %v680 = vsub.f32 %v659, %v674
  %v681 = vsub.f32 %v660, %v674
  %v682 = vsub.f32 %v661, %v674
  %v683 = vmul.f32 %v675, 1.442695
  %v684 = vpow.pop %v683
  %v685 = vmul.f32 %v676, 1.442695
  %v686 = vpow.pop %v685
  %v687 = vmul.f32 %v677, 1.442695
  %v688 = vpow.pop %v687
  %v689 = vmul.f32 %v678, 1.442695
  %v690 = vpow.pop %v689
  %v691 = vmul.f32 %v679, 1.442695
  %v692 = vpow.pop %v691
  %v693 = vmul.f32 %v680, 1.442695
  %v694 = vpow.pop %v693
  %v695 = vmul.f32 %v681, 1.442695
  %v696 = vpow.pop %v695
  %v697 = vmul.f32 %v682, 1.442695
  %v698 = vpow.pop %v697
  %v699 = vadd.f32 %v684, %v686
  %v700 = vadd.f32 %v699, %v688
  %v701 = vadd.f32 %v700, %v690
  %v702 = vadd.f32 %v701, %v692
  %v703 = vadd.f32 %v702, %v694
  %v704 = vadd.f32 %v703, %v696
  %v705 = vadd.f32 %v704, %v698
  %v706 = vrot.slane %v705, 4
  %v707 = vadd.f32 %v705, %v706
  %v708 = vrot.slane %v707, 2
  %v709 = vadd.f32 %v707, %v708
  %v710 = vrot.slane %v709, 1
  %v711 = vadd.f32 %v709, %v710
  %v712 = vrcp.pop %v711
  %v713 = vmul.f32 %v684, %v712
  %v714 = vmul.f32 %v686, %v712
  %v715 = vmul.f32 %v688, %v712
  %v716 = vmul.f32 %v690, %v712
  %v717 = vmul.f32 %v692, %v712
  %v718 = vmul.f32 %v694, %v712
  %v719 = vmul.f32 %v696, %v712
  %v720 = vmul.f32 %v698, %v712
  %v721 = vmul.f32 %v713, %v602
  %v722 = vmul.f32 %v714, %v606
  %v723 = vmul.f32 %v715, %v612
  %v724 = vmul.f32 %v716, %v616
  %v725 = vmul.f32 %v717, %v622
  %v726 = vmul.f32 %v718, %v626
  %v727 = vmul.f32 %v719, %v632
  %v728 = vmul.f32 %v720, %v636
  %v729 = vpack.c.bf16 %v722, %v721
  %v730 = vpack.c.bf16 %v724, %v723
  %v731 = vpack.c.bf16 %v726, %v725
  %v732 = vpack.c.bf16 %v728, %v727
  %vm733 = vcmask 523264
  %v735 = vsel %vm733, %v209, 0
  %737 = vmatprep.subr.bf16.mxu0 0
  %738 = vmatpush1.bf16.msra.mxu0 %v729
  %739 = vmatprep.subr.bf16.mxu0 0
  %740 = vmatpush1.bf16.msra.mxu0 %v730
  %741 = vmatprep.subr.bf16.mxu0 0
  %742 = vmatpush1.bf16.msra.mxu0 %v731
  %743 = vmatprep.subr.bf16.mxu0 0
  %744 = vmatpush1.bf16.msra.mxu0 %v732
  %745 = vmatprep.subr.bf16.mxu0 0
  %746 = vmatpush1.bf16.msra.mxu0 0
  %747 = vmatprep.subr.bf16.mxu0 0
  %748 = vmatpush1.bf16.msra.mxu0 0
  %749 = vmatprep.subr.bf16.mxu0 0
  %750 = vmatpush1.bf16.msra.mxu0 0
  %751 = vmatprep.subr.bf16.mxu0 0
  %752 = vmatpush1.bf16.msra.mxu0 0
  %753 = vmatprep.subr.bf16.mxu0 0
  %754 = vmatpush1.bf16.msra.mxu0 0
  %755 = vmatprep.subr.bf16.mxu0 0
  %756 = vmatpush1.bf16.msra.mxu0 0
  %757 = vmatprep.subr.bf16.mxu0 0
  %758 = vmatpush1.bf16.msra.mxu0 0
  %759 = vmatprep.subr.bf16.mxu0 0
  %760 = vmatpush1.bf16.msra.mxu0 0
  %761 = vmatprep.subr.bf16.mxu0 0
  %762 = vmatpush1.bf16.msra.mxu0 0
  %763 = vmatprep.subr.bf16.mxu0 0
  %764 = vmatpush1.bf16.msra.mxu0 0
  %765 = vmatprep.subr.bf16.mxu0 0
  %766 = vmatpush1.bf16.msra.mxu0 0
  %767 = vmatprep.subr.bf16.mxu0 0
  %768 = vmatpush1.bf16.msra.mxu0 0
  %769 = vmatprep.mubr.bf16.mxu0 0
  %770 = vmatmul.mubr.bf16.gmra.mrb[0].mxu0 %v735
  %v771 = vpop.f32.mrb[0].mxu0
  %v772 = vadd.f32 0.0, %v771
  %v773 = vpop.f32.mrb[0].mxu0
  %v774 = vpop.f32.mrb[0].mxu0
  %v775 = vadd.f32 0.0, %v774
  %v776 = vpop.f32.mrb[0].mxu0
  %777 = vdwg.mxu0
  %v778 = vpack.c.bf16 %v775, %v772
  %v779 = vld [vmem:[%s9] sm:$0xf]
  %v780 = vld [vmem:[%s9 + $0x4] sm:$0xf]
  %v781 = vld [vmem:[%s9 + $0x8] sm:$0xf]
  %v782 = vld [vmem:[%s9 + $0xc] sm:$0xf]
  %v783 = vld [vmem:[%s9 + $0x10] sm:$0xf]
  %v784 = vld [vmem:[%s9 + $0x14] sm:$0xf]
  %v785 = vld [vmem:[%s9 + $0x18] sm:$0xf]
  %v786 = vld [vmem:[%s9 + $0x1c] sm:$0xf]
  %v787 = vld [vmem:[%s9 + $0x20] sm:$0xf]
  %v788 = vld [vmem:[%s9 + $0x24] sm:$0xf]
  %v789 = vld [vmem:[%s9 + $0x28] sm:$0xf]
  %v790 = vld [vmem:[%s9 + $0x2c] sm:$0xf]
  %v791 = vld [vmem:[%s9 + $0x30] sm:$0xf]
  %v792 = vld [vmem:[%s9 + $0x34] sm:$0xf]
  %v793 = vld [vmem:[%s9 + $0x38] sm:$0xf]
  %v794 = vld [vmem:[%s9 + $0x3c] sm:$0xf]
  %v811 = vunpack.c.l.b16 %v779
  %v812 = vunpack.c.l.b16 %v780
  %v813 = vunpack.c.l.b16 %v781
  %v814 = vunpack.c.l.b16 %v782
  %v815 = vunpack.c.l.b16 %v783
  %v816 = vunpack.c.l.b16 %v784
  %v817 = vunpack.c.l.b16 %v785
  %v818 = vunpack.c.l.b16 %v786
  %v819 = vunpack.c.l.b16 %v787
  %v820 = vunpack.c.l.b16 %v788
  %v821 = vunpack.c.l.b16 %v789
  %v822 = vunpack.c.l.b16 %v790
  %v823 = vunpack.c.l.b16 %v791
  %v824 = vunpack.c.l.b16 %v792
  %v825 = vunpack.c.l.b16 %v793
  %v826 = vunpack.c.l.b16 %v794
  %v827 = vpack.c.b16 %v812, %v811
  %v828 = vpack.c.b16 %v814, %v813
  %v829 = vpack.c.b16 %v816, %v815
  %v830 = vpack.c.b16 %v818, %v817
  %v831 = vpack.c.b16 %v820, %v819
  %v832 = vpack.c.b16 %v822, %v821
  %v833 = vpack.c.b16 %v824, %v823
  %v834 = vpack.c.b16 %v826, %v825
  %843 = vmatprep.subr.bf16.mxu0 0
  %844 = vmatpush1.bf16.msra.mxu0 %v827
  %845 = vmatprep.subr.bf16.mxu0 0
  %846 = vmatpush1.bf16.msra.mxu0 %v828
  %847 = vmatprep.subr.bf16.mxu0 0
  %848 = vmatpush1.bf16.msra.mxu0 %v829
  %849 = vmatprep.subr.bf16.mxu0 0
  %850 = vmatpush1.bf16.msra.mxu0 %v830
  %851 = vmatprep.subr.bf16.mxu0 0
  %852 = vmatpush1.bf16.msra.mxu0 %v831
  %853 = vmatprep.subr.bf16.mxu0 0
  %854 = vmatpush1.bf16.msra.mxu0 %v832
  %855 = vmatprep.subr.bf16.mxu0 0
  %856 = vmatpush1.bf16.msra.mxu0 %v833
  %857 = vmatprep.subr.bf16.mxu0 0
  %858 = vmatpush1.bf16.msra.mxu0 %v834
  %859 = vmatprep.subr.bf16.mxu0 0
  %860 = vmatpush1.bf16.msra.mxu0 0
  %861 = vmatprep.subr.bf16.mxu0 0
  %862 = vmatpush1.bf16.msra.mxu0 0
  %863 = vmatprep.subr.bf16.mxu0 0
  %864 = vmatpush1.bf16.msra.mxu0 0
  %865 = vmatprep.subr.bf16.mxu0 0
  %866 = vmatpush1.bf16.msra.mxu0 0
  %867 = vmatprep.subr.bf16.mxu0 0
  %868 = vmatpush1.bf16.msra.mxu0 0
  %869 = vmatprep.subr.bf16.mxu0 0
  %870 = vmatpush1.bf16.msra.mxu0 0
  %871 = vmatprep.subr.bf16.mxu0 0
  %872 = vmatpush1.bf16.msra.mxu0 0
  %873 = vmatprep.subr.bf16.mxu0 0
  %874 = vmatpush1.bf16.msra.mxu0 0
  %875 = vmatprep.mubr.bf16.mxu0 0
  %876 = vmatmul.mubr.bf16.gmra.mrb[0].mxu0 %v778
  %v877 = vpop.f32.mrb[0].mxu0
  %v878 = vadd.f32 0.0, %v877
  %v879 = vpop.f32.mrb[0].mxu0
  %v880 = vpop.f32.mrb[0].mxu0
  %v881 = vadd.f32 0.0, %v880
  %v882 = vpop.f32.mrb[0].mxu0
  %883 = vdwg.mxu0
  %vm884 = vcmp.gt.f32.partialorder %v878, 0.0
  %vm885 = vcmp.gt.f32.partialorder %v881, 0.0
  %v886 = vmin.f32 %v878, 0.0
  %v887 = vmin.f32 %v881, 0.0
  %v888 = vmul.f32 %v886, 1.442695
  %v889 = vpow.pop %v888
  %v890 = vmul.f32 %v887, 1.442695
  %v891 = vpow.pop %v890
  %v892 = vsub.f32 %v889, 1.0
  %v893 = vsub.f32 %v891, 1.0
  %v894 = vsel %vm884, %v878, %v892
  %v895 = vsel %vm885, %v881, %v893
  %v896 = vpack.c.bf16 %v895, %v894
  %s897 = scalar_lea.vmem %s6, 16
  %v898 = vld [vmem:[%s897] sm:$0xf]
  %v899 = vld [vmem:[%s897 + $0x4] sm:$0xf]
  %v900 = vld [vmem:[%s897 + $0x8] sm:$0xf]
  %v901 = vld [vmem:[%s897 + $0xc] sm:$0xf]
  %v906 = vunpack.c.l.b16 %v898
  %v907 = vunpack.c.l.b16 %v899
  %v908 = vunpack.c.l.b16 %v900
  %v909 = vunpack.c.l.b16 %v901
  %v910 = vpack.c.b16 %v907, %v906
  %v911 = vpack.c.b16 %v909, %v908
  %v915 = vsel %vm299, %v896, 0
  %917 = vmatprep.subr.bf16.mxu0 0
  %918 = vmatpush1.bf16.msra.mxu0 %v910
  %919 = vmatprep.subr.bf16.mxu0 0
  %920 = vmatpush1.bf16.msra.mxu0 %v911
  %921 = vmatprep.subr.bf16.mxu0 0
  %922 = vmatpush1.bf16.msra.mxu0 0
  %923 = vmatprep.subr.bf16.mxu0 0
  %924 = vmatpush1.bf16.msra.mxu0 0
  %925 = vmatprep.subr.bf16.mxu0 0
  %926 = vmatpush1.bf16.msra.mxu0 0
  %927 = vmatprep.subr.bf16.mxu0 0
  %928 = vmatpush1.bf16.msra.mxu0 0
  %929 = vmatprep.subr.bf16.mxu0 0
  %930 = vmatpush1.bf16.msra.mxu0 0
  %931 = vmatprep.subr.bf16.mxu0 0
  %932 = vmatpush1.bf16.msra.mxu0 0
  %933 = vmatprep.subr.bf16.mxu0 0
  %934 = vmatpush1.bf16.msra.mxu0 0
  %935 = vmatprep.subr.bf16.mxu0 0
  %936 = vmatpush1.bf16.msra.mxu0 0
  %937 = vmatprep.subr.bf16.mxu0 0
  %938 = vmatpush1.bf16.msra.mxu0 0
  %939 = vmatprep.subr.bf16.mxu0 0
  %940 = vmatpush1.bf16.msra.mxu0 0
  %941 = vmatprep.subr.bf16.mxu0 0
  %942 = vmatpush1.bf16.msra.mxu0 0
  %943 = vmatprep.subr.bf16.mxu0 0
  %944 = vmatpush1.bf16.msra.mxu0 0
  %945 = vmatprep.subr.bf16.mxu0 0
  %946 = vmatpush1.bf16.msra.mxu0 0
  %947 = vmatprep.subr.bf16.mxu0 0
  %948 = vmatpush1.bf16.msra.mxu0 0
  %949 = vmatprep.mubr.bf16.mxu0 0
  %950 = vmatmul.mubr.bf16.gmra.mrb[0].mxu0 %v915
  %v951 = vpop.f32.mrb[0].mxu0
  %v952 = vadd.f32 0.0, %v951
  %v953 = vpop.f32.mrb[0].mxu0
  %v954 = vpop.f32.mrb[0].mxu0
  %v955 = vadd.f32 0.0, %v954
  %v956 = vpop.f32.mrb[0].mxu0
  %957 = vdwg.mxu0
  %v958 = vpack.c.bf16 %v955, %v952
  %s959 = scalar_lea.vmem %s7, 64
  %v960 = vld [vmem:[%s959] sm:$0xf]
  %v961 = vld [vmem:[%s959 + $0x4] sm:$0xf]
  %v962 = vld [vmem:[%s959 + $0x8] sm:$0xf]
  %v963 = vld [vmem:[%s959 + $0xc] sm:$0xf]
  %v964 = vld [vmem:[%s959 + $0x10] sm:$0xf]
  %v965 = vld [vmem:[%s959 + $0x14] sm:$0xf]
  %v966 = vld [vmem:[%s959 + $0x18] sm:$0xf]
  %v967 = vld [vmem:[%s959 + $0x1c] sm:$0xf]
  %v968 = vld [vmem:[%s959 + $0x20] sm:$0xf]
  %v969 = vld [vmem:[%s959 + $0x24] sm:$0xf]
  %v970 = vld [vmem:[%s959 + $0x28] sm:$0xf]
  %v971 = vld [vmem:[%s959 + $0x2c] sm:$0xf]
  %v972 = vld [vmem:[%s959 + $0x30] sm:$0xf]
  %v973 = vld [vmem:[%s959 + $0x34] sm:$0xf]
  %v974 = vld [vmem:[%s959 + $0x38] sm:$0xf]
  %v975 = vld [vmem:[%s959 + $0x3c] sm:$0xf]
  %v992 = vunpack.c.l.b16 %v960
  %v993 = vunpack.c.l.b16 %v961
  %v994 = vunpack.c.l.b16 %v962
  %v995 = vunpack.c.l.b16 %v963
  %v996 = vunpack.c.l.b16 %v964
  %v997 = vunpack.c.l.b16 %v965
  %v998 = vunpack.c.l.b16 %v966
  %v999 = vunpack.c.l.b16 %v967
  %v1000 = vunpack.c.l.b16 %v968
  %v1001 = vunpack.c.l.b16 %v969
  %v1002 = vunpack.c.l.b16 %v970
  %v1003 = vunpack.c.l.b16 %v971
  %v1004 = vunpack.c.l.b16 %v972
  %v1005 = vunpack.c.l.b16 %v973
  %v1006 = vunpack.c.l.b16 %v974
  %v1007 = vunpack.c.l.b16 %v975
  %v1008 = vpack.c.b16 %v993, %v992
  %v1009 = vpack.c.b16 %v995, %v994
  %v1010 = vpack.c.b16 %v997, %v996
  %v1011 = vpack.c.b16 %v999, %v998
  %v1012 = vpack.c.b16 %v1001, %v1000
  %v1013 = vpack.c.b16 %v1003, %v1002
  %v1014 = vpack.c.b16 %v1005, %v1004
  %v1015 = vpack.c.b16 %v1007, %v1006
  %1024 = vmatprep.subr.bf16.mxu0 0
  %1025 = vmatpush1.bf16.msra.mxu0 %v1008
  %1026 = vmatprep.subr.bf16.mxu0 0
  %1027 = vmatpush1.bf16.msra.mxu0 %v1009
  %1028 = vmatprep.subr.bf16.mxu0 0
  %1029 = vmatpush1.bf16.msra.mxu0 %v1010
  %1030 = vmatprep.subr.bf16.mxu0 0
  %1031 = vmatpush1.bf16.msra.mxu0 %v1011
  %1032 = vmatprep.subr.bf16.mxu0 0
  %1033 = vmatpush1.bf16.msra.mxu0 %v1012
  %1034 = vmatprep.subr.bf16.mxu0 0
  %1035 = vmatpush1.bf16.msra.mxu0 %v1013
  %1036 = vmatprep.subr.bf16.mxu0 0
  %1037 = vmatpush1.bf16.msra.mxu0 %v1014
  %1038 = vmatprep.subr.bf16.mxu0 0
  %1039 = vmatpush1.bf16.msra.mxu0 %v1015
  %1040 = vmatprep.subr.bf16.mxu0 0
  %1041 = vmatpush1.bf16.msra.mxu0 0
  %1042 = vmatprep.subr.bf16.mxu0 0
  %1043 = vmatpush1.bf16.msra.mxu0 0
  %1044 = vmatprep.subr.bf16.mxu0 0
  %1045 = vmatpush1.bf16.msra.mxu0 0
  %1046 = vmatprep.subr.bf16.mxu0 0
  %1047 = vmatpush1.bf16.msra.mxu0 0
  %1048 = vmatprep.subr.bf16.mxu0 0
  %1049 = vmatpush1.bf16.msra.mxu0 0
  %1050 = vmatprep.subr.bf16.mxu0 0
  %1051 = vmatpush1.bf16.msra.mxu0 0
  %1052 = vmatprep.subr.bf16.mxu0 0
  %1053 = vmatpush1.bf16.msra.mxu0 0
  %1054 = vmatprep.subr.bf16.mxu0 0
  %1055 = vmatpush1.bf16.msra.mxu0 0
  %1056 = vmatprep.mubr.bf16.mxu0 0
  %1057 = vmatmul.mubr.bf16.gmra.mrb[0].mxu0 %v958
  %v1058 = vpop.f32.mrb[0].mxu0
  %v1059 = vadd.f32 0.0, %v1058
  %v1060 = vpop.f32.mrb[0].mxu0
  %v1061 = vpop.f32.mrb[0].mxu0
  %v1062 = vadd.f32 0.0, %v1061
  %v1063 = vpop.f32.mrb[0].mxu0
  %1064 = vdwg.mxu0
  %v1065 = vpack.c.bf16 %v1062, %v1059
  %s1066 = scalar_lea.vmem %s8, 64
  %v1067 = vld [vmem:[%s1066] sm:$0xf]
  %v1068 = vld [vmem:[%s1066 + $0x4] sm:$0xf]
  %v1069 = vld [vmem:[%s1066 + $0x8] sm:$0xf]
  %v1070 = vld [vmem:[%s1066 + $0xc] sm:$0xf]
  %v1071 = vld [vmem:[%s1066 + $0x10] sm:$0xf]
  %v1072 = vld [vmem:[%s1066 + $0x14] sm:$0xf]
  %v1073 = vld [vmem:[%s1066 + $0x18] sm:$0xf]
  %v1074 = vld [vmem:[%s1066 + $0x1c] sm:$0xf]
  %v1075 = vld [vmem:[%s1066 + $0x20] sm:$0xf]
  %v1076 = vld [vmem:[%s1066 + $0x24] sm:$0xf]
  %v1077 = vld [vmem:[%s1066 + $0x28] sm:$0xf]
  %v1078 = vld [vmem:[%s1066 + $0x2c] sm:$0xf]
  %v1079 = vld [vmem:[%s1066 + $0x30] sm:$0xf]
  %v1080 = vld [vmem:[%s1066 + $0x34] sm:$0xf]
  %v1081 = vld [vmem:[%s1066 + $0x38] sm:$0xf]
  %v1082 = vld [vmem:[%s1066 + $0x3c] sm:$0xf]
  %v1099 = vunpack.c.l.b16 %v1067
  %v1100 = vunpack.c.l.b16 %v1068
  %v1101 = vunpack.c.l.b16 %v1069
  %v1102 = vunpack.c.l.b16 %v1070
  %v1103 = vunpack.c.l.b16 %v1071
  %v1104 = vunpack.c.l.b16 %v1072
  %v1105 = vunpack.c.l.b16 %v1073
  %v1106 = vunpack.c.l.b16 %v1074
  %v1107 = vunpack.c.l.b16 %v1075
  %v1108 = vunpack.c.l.b16 %v1076
  %v1109 = vunpack.c.l.b16 %v1077
  %v1110 = vunpack.c.l.b16 %v1078
  %v1111 = vunpack.c.l.b16 %v1079
  %v1112 = vunpack.c.l.b16 %v1080
  %v1113 = vunpack.c.l.b16 %v1081
  %v1114 = vunpack.c.l.b16 %v1082
  %v1115 = vpack.c.b16 %v1100, %v1099
  %v1116 = vpack.c.b16 %v1102, %v1101
  %v1117 = vpack.c.b16 %v1104, %v1103
  %v1118 = vpack.c.b16 %v1106, %v1105
  %v1119 = vpack.c.b16 %v1108, %v1107
  %v1120 = vpack.c.b16 %v1110, %v1109
  %v1121 = vpack.c.b16 %v1112, %v1111
  %v1122 = vpack.c.b16 %v1114, %v1113
  %1131 = vmatprep.subr.bf16.mxu0 0
  %1132 = vmatpush1.bf16.msra.mxu0 %v1115
  %1133 = vmatprep.subr.bf16.mxu0 0
  %1134 = vmatpush1.bf16.msra.mxu0 %v1116
  %1135 = vmatprep.subr.bf16.mxu0 0
  %1136 = vmatpush1.bf16.msra.mxu0 %v1117
  %1137 = vmatprep.subr.bf16.mxu0 0
  %1138 = vmatpush1.bf16.msra.mxu0 %v1118
  %1139 = vmatprep.subr.bf16.mxu0 0
  %1140 = vmatpush1.bf16.msra.mxu0 %v1119
  %1141 = vmatprep.subr.bf16.mxu0 0
  %1142 = vmatpush1.bf16.msra.mxu0 %v1120
  %1143 = vmatprep.subr.bf16.mxu0 0
  %1144 = vmatpush1.bf16.msra.mxu0 %v1121
  %1145 = vmatprep.subr.bf16.mxu0 0
  %1146 = vmatpush1.bf16.msra.mxu0 %v1122
  %1147 = vmatprep.subr.bf16.mxu0 0
  %1148 = vmatpush1.bf16.msra.mxu0 0
  %1149 = vmatprep.subr.bf16.mxu0 0
  %1150 = vmatpush1.bf16.msra.mxu0 0
  %1151 = vmatprep.subr.bf16.mxu0 0
  %1152 = vmatpush1.bf16.msra.mxu0 0
  %1153 = vmatprep.subr.bf16.mxu0 0
  %1154 = vmatpush1.bf16.msra.mxu0 0
  %1155 = vmatprep.subr.bf16.mxu0 0
  %1156 = vmatpush1.bf16.msra.mxu0 0
  %1157 = vmatprep.subr.bf16.mxu0 0
  %1158 = vmatpush1.bf16.msra.mxu0 0
  %1159 = vmatprep.subr.bf16.mxu0 0
  %1160 = vmatpush1.bf16.msra.mxu0 0
  %1161 = vmatprep.subr.bf16.mxu0 0
  %1162 = vmatpush1.bf16.msra.mxu0 0
  %1163 = vmatprep.mubr.bf16.mxu0 0
  %1164 = vmatmul.mubr.bf16.gmra.mrb[0].mxu0 %v958
  %v1165 = vpop.f32.mrb[0].mxu0
  %v1166 = vadd.f32 0.0, %v1165
  %v1167 = vpop.f32.mrb[0].mxu0
  %v1168 = vpop.f32.mrb[0].mxu0
  %v1169 = vadd.f32 0.0, %v1168
  %v1170 = vpop.f32.mrb[0].mxu0
  %1171 = vdwg.mxu0
  %v1172 = vpack.c.bf16 %v1169, %v1166
  %1173 = vmatprep.subr.bf16.mxu0 0
  %1174 = vmatpush1.bf16.msra.mxu0 %v1065
  %1175 = vmatprep.subr.bf16.mxu0 %v958
  %1176 = vmatpush1.bf16.msra.mxu0 %v1172
  %1177 = vmatprep.subr.bf16.mxu0 0
  %1178 = vmatpush1.bf16.msra.mxu0 0
  %1179 = vmatprep.subr.bf16.mxu0 0
  %1180 = vmatpush1.bf16.msra.mxu0 0
  %1181 = vmatprep.subr.bf16.mxu0 0
  %1182 = vmatpush1.bf16.msra.mxu0 0
  %1183 = vmatprep.subr.bf16.mxu0 0
  %1184 = vmatpush1.bf16.msra.mxu0 0
  %1185 = vmatprep.subr.bf16.mxu0 0
  %1186 = vmatpush1.bf16.msra.mxu0 0
  %1187 = vmatprep.subr.bf16.mxu0 0
  %1188 = vmatpush1.bf16.msra.mxu0 0
  %1189 = vmatprep.subr.bf16.mxu0 0
  %1190 = vmatpush1.bf16.msra.mxu0 0
  %1191 = vmatprep.subr.bf16.mxu0 0
  %1192 = vmatpush1.bf16.msra.mxu0 0
  %1193 = vmatprep.subr.bf16.mxu0 0
  %1194 = vmatpush1.bf16.msra.mxu0 0
  %1195 = vmatprep.subr.bf16.mxu0 0
  %1196 = vmatpush1.bf16.msra.mxu0 0
  %1197 = vmatprep.subr.bf16.mxu0 0
  %1198 = vmatpush1.bf16.msra.mxu0 0
  %1199 = vmatprep.subr.bf16.mxu0 0
  %1200 = vmatpush1.bf16.msra.mxu0 0
  %1201 = vmatprep.subr.bf16.mxu0 0
  %1202 = vmatpush1.bf16.msra.mxu0 0
  %1203 = vmatprep.subr.bf16.mxu0 0
  %1204 = vmatpush1.bf16.msra.mxu0 0
  %1205 = vmatprep.mubr.bf16.mxu0 0
  %1206 = vmatmul.mubr.bf16.gmra.mrb[0].mxu0 %v557
  %v1207 = vpop.f32.mrb[0].mxu0
  %v1208 = vadd.f32 0.0, %v1207
  %v1209 = vpop.f32.mrb[0].mxu0
  %v1210 = vadd.f32 0.0, %v1209
  %v1211 = vpop.f32.mrb[0].mxu0
  %v1212 = vadd.f32 0.0, %v1211
  %v1213 = vpop.f32.mrb[0].mxu0
  %v1214 = vadd.f32 0.0, %v1213
  %1215 = vmatprep.mubr.bf16.mxu0 0
  %1216 = vmatmul.mubr.bf16.gmra.mrb[0].mxu0 %v559
  %v1217 = vpop.f32.mrb[0].mxu0
  %v1218 = vadd.f32 0.0, %v1217
  %v1219 = vpop.f32.mrb[0].mxu0
  %v1220 = vadd.f32 0.0, %v1219
  %v1221 = vpop.f32.mrb[0].mxu0
  %v1222 = vadd.f32 0.0, %v1221
  %v1223 = vpop.f32.mrb[0].mxu0
  %v1224 = vadd.f32 0.0, %v1223
  %1225 = vmatprep.mubr.bf16.mxu0 0
  %1226 = vmatmul.mubr.bf16.gmra.mrb[0].mxu0 %v561
  %v1227 = vpop.f32.mrb[0].mxu0
  %v1228 = vadd.f32 0.0, %v1227
  %v1229 = vpop.f32.mrb[0].mxu0
  %v1230 = vadd.f32 0.0, %v1229
  %v1231 = vpop.f32.mrb[0].mxu0
  %v1232 = vadd.f32 0.0, %v1231
  %v1233 = vpop.f32.mrb[0].mxu0
  %v1234 = vadd.f32 0.0, %v1233
  %1235 = vmatprep.mubr.bf16.mxu0 0
  %1236 = vmatmul.mubr.bf16.gmra.mrb[0].mxu0 %v563
  %v1237 = vpop.f32.mrb[0].mxu0
  %v1238 = vadd.f32 0.0, %v1237
  %v1239 = vpop.f32.mrb[0].mxu0
  %v1240 = vadd.f32 0.0, %v1239
  %v1241 = vpop.f32.mrb[0].mxu0
  %v1242 = vadd.f32 0.0, %v1241
  %v1243 = vpop.f32.mrb[0].mxu0
  %v1244 = vadd.f32 0.0, %v1243
  %1245 = vdwg.mxu0
  %vm1246 = vcmp.ge.f32.partialorder %v1208, 0.0
  %vm1247 = vcmp.ge.f32.partialorder %v1212, 0.0
  %vm1248 = vcmp.ge.f32.partialorder %v1218, 0.0
  %vm1249 = vcmp.ge.f32.partialorder %v1222, 0.0
  %vm1250 = vcmp.ge.f32.partialorder %v1228, 0.0
  %vm1251 = vcmp.ge.f32.partialorder %v1232, 0.0
  %vm1252 = vcmp.ge.f32.partialorder %v1238, 0.0
  %vm1253 = vcmp.ge.f32.partialorder %v1242, 0.0
  %v1254 = vmul.f32 %v1208, 0.01
  %v1255 = vmul.f32 %v1212, 0.01
  %v1256 = vmul.f32 %v1218, 0.01
  %v1257 = vmul.f32 %v1222, 0.01
  %v1258 = vmul.f32 %v1228, 0.01
  %v1259 = vmul.f32 %v1232, 0.01
  %v1260 = vmul.f32 %v1238, 0.01
  %v1261 = vmul.f32 %v1242, 0.01
  %v1262 = vsel %vm1246, %v1208, %v1254
  %v1263 = vsel %vm1247, %v1212, %v1255
  %v1264 = vsel %vm1248, %v1218, %v1256
  %v1265 = vsel %vm1249, %v1222, %v1257
  %v1266 = vsel %vm1250, %v1228, %v1258
  %v1267 = vsel %vm1251, %v1232, %v1259
  %v1268 = vsel %vm1252, %v1238, %v1260
  %v1269 = vsel %vm1253, %v1242, %v1261
  %v1270 = vmax.f32 %v1262, %v1266
  %v1271 = vmax.f32 %v1263, %v1267
  %v1272 = vmax.f32 %v1264, %v1268
  %v1273 = vmax.f32 %v1265, %v1269
  %v1274 = vmax.f32 %v1270, %v1271
  %v1275 = vmax.f32 %v1272, %v1273
  %v1276 = vmax.f32 %v1274, %v1275
  %v1277 = vrot.slane %v1276, 4
  %v1278 = vmax.f32 %v1276, %v1277
  %v1279 = vrot.slane %v1278, 2
  %v1280 = vmax.f32 %v1278, %v1279
  %v1281 = vrot.slane %v1280, 1
  %v1282 = vmax.f32 %v1280, %v1281
  %v1283 = vsub.f32 %v1262, %v1282
  %v1284 = vsub.f32 %v1263, %v1282
  %v1285 = vsub.f32 %v1264, %v1282
  %v1286 = vsub.f32 %v1265, %v1282
  %v1287 = vsub.f32 %v1266, %v1282
  %v1288 = vsub.f32 %v1267, %v1282
  %v1289 = vsub.f32 %v1268, %v1282
  %v1290 = vsub.f32 %v1269, %v1282
  %v1291 = vmul.f32 %v1283, 1.442695
  %v1292 = vpow.pop %v1291
  %v1293 = vmul.f32 %v1284, 1.442695
  %v1294 = vpow.pop %v1293
  %v1295 = vmul.f32 %v1285, 1.442695
  %v1296 = vpow.pop %v1295
  %v1297 = vmul.f32 %v1286, 1.442695
  %v1298 = vpow.pop %v1297
  %v1299 = vmul.f32 %v1287, 1.442695
  %v1300 = vpow.pop %v1299
  %v1301 = vmul.f32 %v1288, 1.442695
  %v1302 = vpow.pop %v1301
  %v1303 = vmul.f32 %v1289, 1.442695
  %v1304 = vpow.pop %v1303
  %v1305 = vmul.f32 %v1290, 1.442695
  %v1306 = vpow.pop %v1305
  %v1307 = vadd.f32 %v1292, %v1294
  %v1308 = vadd.f32 %v1307, %v1296
  %v1309 = vadd.f32 %v1308, %v1298
  %v1310 = vadd.f32 %v1309, %v1300
  %v1311 = vadd.f32 %v1310, %v1302
  %v1312 = vadd.f32 %v1311, %v1304
  %v1313 = vadd.f32 %v1312, %v1306
  %v1314 = vrot.slane %v1313, 4
  %v1315 = vadd.f32 %v1313, %v1314
  %v1316 = vrot.slane %v1315, 2
  %v1317 = vadd.f32 %v1315, %v1316
  %v1318 = vrot.slane %v1317, 1
  %v1319 = vadd.f32 %v1317, %v1318
  %v1320 = vrcp.pop %v1319
  %v1321 = vmul.f32 %v1292, %v1320
  %v1322 = vmul.f32 %v1294, %v1320
  %v1323 = vmul.f32 %v1296, %v1320
  %v1324 = vmul.f32 %v1298, %v1320
  %v1325 = vmul.f32 %v1300, %v1320
  %v1326 = vmul.f32 %v1302, %v1320
  %v1327 = vmul.f32 %v1304, %v1320
  %v1328 = vmul.f32 %v1306, %v1320
  %v1329 = vmul.f32 %v1321, %v1210
  %v1330 = vmul.f32 %v1322, %v1214
  %v1331 = vmul.f32 %v1323, %v1220
  %v1332 = vmul.f32 %v1324, %v1224
  %v1333 = vmul.f32 %v1325, %v1230
  %v1334 = vmul.f32 %v1326, %v1234
  %v1335 = vmul.f32 %v1327, %v1240
  %v1336 = vmul.f32 %v1328, %v1244
  %v1337 = vpack.c.bf16 %v1330, %v1329
  %v1338 = vpack.c.bf16 %v1332, %v1331
  %v1339 = vpack.c.bf16 %v1334, %v1333
  %v1340 = vpack.c.bf16 %v1336, %v1335
  %1341 = vmatprep.subr.bf16.mxu0 0
  %1342 = vmatpush1.bf16.msra.mxu0 %v1337
  %1343 = vmatprep.subr.bf16.mxu0 0
  %1344 = vmatpush1.bf16.msra.mxu0 %v1338
  %1345 = vmatprep.subr.bf16.mxu0 0
  %1346 = vmatpush1.bf16.msra.mxu0 %v1339
  %1347 = vmatprep.subr.bf16.mxu0 0
  %1348 = vmatpush1.bf16.msra.mxu0 %v1340
  %1349 = vmatprep.subr.bf16.mxu0 0
  %1350 = vmatpush1.bf16.msra.mxu0 0
  %1351 = vmatprep.subr.bf16.mxu0 0
  %1352 = vmatpush1.bf16.msra.mxu0 0
  %1353 = vmatprep.subr.bf16.mxu0 0
  %1354 = vmatpush1.bf16.msra.mxu0 0
  %1355 = vmatprep.subr.bf16.mxu0 0
  %1356 = vmatpush1.bf16.msra.mxu0 0
  %1357 = vmatprep.subr.bf16.mxu0 0
  %1358 = vmatpush1.bf16.msra.mxu0 0
  %1359 = vmatprep.subr.bf16.mxu0 0
  %1360 = vmatpush1.bf16.msra.mxu0 0
  %1361 = vmatprep.subr.bf16.mxu0 0
  %1362 = vmatpush1.bf16.msra.mxu0 0
  %1363 = vmatprep.subr.bf16.mxu0 0
  %1364 = vmatpush1.bf16.msra.mxu0 0
  %1365 = vmatprep.subr.bf16.mxu0 0
  %1366 = vmatpush1.bf16.msra.mxu0 0
  %1367 = vmatprep.subr.bf16.mxu0 0
  %1368 = vmatpush1.bf16.msra.mxu0 0
  %1369 = vmatprep.subr.bf16.mxu0 0
  %1370 = vmatpush1.bf16.msra.mxu0 0
  %1371 = vmatprep.subr.bf16.mxu0 0
  %1372 = vmatpush1.bf16.msra.mxu0 0
  %1373 = vmatprep.mubr.bf16.mxu0 0
  %1374 = vmatmul.mubr.bf16.gmra.mrb[0].mxu0 %v735
  %v1375 = vpop.f32.mrb[0].mxu0
  %v1376 = vadd.f32 0.0, %v1375
  %v1377 = vpop.f32.mrb[0].mxu0
  %v1378 = vpop.f32.mrb[0].mxu0
  %v1379 = vadd.f32 0.0, %v1378
  %v1380 = vpop.f32.mrb[0].mxu0
  %1381 = vdwg.mxu0
  %v1382 = vpack.c.bf16 %v1379, %v1376
  %s1383 = scalar_lea.vmem %s9, 64
  %v1384 = vld [vmem:[%s1383] sm:$0xf]
  %v1385 = vld [vmem:[%s1383 + $0x4] sm:$0xf]
  %v1386 = vld [vmem:[%s1383 + $0x8] sm:$0xf]
  %v1387 = vld [vmem:[%s1383 + $0xc] sm:$0xf]
  %v1388 = vld [vmem:[%s1383 + $0x10] sm:$0xf]
  %v1389 = vld [vmem:[%s1383 + $0x14] sm:$0xf]
  %v1390 = vld [vmem:[%s1383 + $0x18] sm:$0xf]
  %v1391 = vld [vmem:[%s1383 + $0x1c] sm:$0xf]
  %v1392 = vld [vmem:[%s1383 + $0x20] sm:$0xf]
  %v1393 = vld [vmem:[%s1383 + $0x24] sm:$0xf]
  %v1394 = vld [vmem:[%s1383 + $0x28] sm:$0xf]
  %v1395 = vld [vmem:[%s1383 + $0x2c] sm:$0xf]
  %v1396 = vld [vmem:[%s1383 + $0x30] sm:$0xf]
  %v1397 = vld [vmem:[%s1383 + $0x34] sm:$0xf]
  %v1398 = vld [vmem:[%s1383 + $0x38] sm:$0xf]
  %v1399 = vld [vmem:[%s1383 + $0x3c] sm:$0xf]
  %v1416 = vunpack.c.l.b16 %v1384
  %v1417 = vunpack.c.l.b16 %v1385
  %v1418 = vunpack.c.l.b16 %v1386
  %v1419 = vunpack.c.l.b16 %v1387
  %v1420 = vunpack.c.l.b16 %v1388
  %v1421 = vunpack.c.l.b16 %v1389
  %v1422 = vunpack.c.l.b16 %v1390
  %v1423 = vunpack.c.l.b16 %v1391
  %v1424 = vunpack.c.l.b16 %v1392
  %v1425 = vunpack.c.l.b16 %v1393
  %v1426 = vunpack.c.l.b16 %v1394
  %v1427 = vunpack.c.l.b16 %v1395
  %v1428 = vunpack.c.l.b16 %v1396
  %v1429 = vunpack.c.l.b16 %v1397
  %v1430 = vunpack.c.l.b16 %v1398
  %v1431 = vunpack.c.l.b16 %v1399
  %v1432 = vpack.c.b16 %v1417, %v1416
  %v1433 = vpack.c.b16 %v1419, %v1418
  %v1434 = vpack.c.b16 %v1421, %v1420
  %v1435 = vpack.c.b16 %v1423, %v1422
  %v1436 = vpack.c.b16 %v1425, %v1424
  %v1437 = vpack.c.b16 %v1427, %v1426
  %v1438 = vpack.c.b16 %v1429, %v1428
  %v1439 = vpack.c.b16 %v1431, %v1430
  %1448 = vmatprep.subr.bf16.mxu0 0
  %1449 = vmatpush1.bf16.msra.mxu0 %v1432
  %1450 = vmatprep.subr.bf16.mxu0 0
  %1451 = vmatpush1.bf16.msra.mxu0 %v1433
  %1452 = vmatprep.subr.bf16.mxu0 0
  %1453 = vmatpush1.bf16.msra.mxu0 %v1434
  %1454 = vmatprep.subr.bf16.mxu0 0
  %1455 = vmatpush1.bf16.msra.mxu0 %v1435
  %1456 = vmatprep.subr.bf16.mxu0 0
  %1457 = vmatpush1.bf16.msra.mxu0 %v1436
  %1458 = vmatprep.subr.bf16.mxu0 0
  %1459 = vmatpush1.bf16.msra.mxu0 %v1437
  %1460 = vmatprep.subr.bf16.mxu0 0
  %1461 = vmatpush1.bf16.msra.mxu0 %v1438
  %1462 = vmatprep.subr.bf16.mxu0 0
  %1463 = vmatpush1.bf16.msra.mxu0 %v1439
  %1464 = vmatprep.subr.bf16.mxu0 0
  %1465 = vmatpush1.bf16.msra.mxu0 0
  %1466 = vmatprep.subr.bf16.mxu0 0
  %1467 = vmatpush1.bf16.msra.mxu0 0
  %1468 = vmatprep.subr.bf16.mxu0 0
  %1469 = vmatpush1.bf16.msra.mxu0 0
  %1470 = vmatprep.subr.bf16.mxu0 0
  %1471 = vmatpush1.bf16.msra.mxu0 0
  %1472 = vmatprep.subr.bf16.mxu0 0
  %1473 = vmatpush1.bf16.msra.mxu0 0
  %1474 = vmatprep.subr.bf16.mxu0 0
  %1475 = vmatpush1.bf16.msra.mxu0 0
  %1476 = vmatprep.subr.bf16.mxu0 0
  %1477 = vmatpush1.bf16.msra.mxu0 0
  %1478 = vmatprep.subr.bf16.mxu0 0
  %1479 = vmatpush1.bf16.msra.mxu0 0
  %1480 = vmatprep.mubr.bf16.mxu0 0
  %1481 = vmatmul.mubr.bf16.gmra.mrb[0].mxu0 %v1382
  %v1482 = vpop.f32.mrb[0].mxu0
  %v1483 = vadd.f32 0.0, %v1482
  %v1484 = vpop.f32.mrb[0].mxu0
  %v1485 = vpop.f32.mrb[0].mxu0
  %v1486 = vadd.f32 0.0, %v1485
  %v1487 = vpop.f32.mrb[0].mxu0
  %1488 = vdwg.mxu0
  %vm1489 = vcmp.gt.f32.partialorder %v1483, 0.0
  %vm1490 = vcmp.gt.f32.partialorder %v1486, 0.0
  %v1491 = vmin.f32 %v1483, 0.0
  %v1492 = vmin.f32 %v1486, 0.0
  %v1493 = vmul.f32 %v1491, 1.442695
  %v1494 = vpow.pop %v1493
  %v1495 = vmul.f32 %v1492, 1.442695
  %v1496 = vpow.pop %v1495
  %v1497 = vsub.f32 %v1494, 1.0
  %v1498 = vsub.f32 %v1496, 1.0
  %v1499 = vsel %vm1489, %v1483, %v1497
  %v1500 = vsel %vm1490, %v1486, %v1498
  %v1501 = vpack.c.bf16 %v1500, %v1499
  %v1502 = vld [vmem:[%s10] sm:$0xf]
  %v1503 = vld [vmem:[%s10 + $0x4] sm:$0xf]
  %v1504 = vld [vmem:[%s10 + $0x8] sm:$0xf]
  %v1505 = vld [vmem:[%s10 + $0xc] sm:$0xf]
  %v1506 = vld [vmem:[%s11] sm:$0x1]
  %v1508 = vlaneseq
  %v1509 = vshrl.u32 %v1508, 7
  %v1510 = vsub.s32 0, %v1509
  %v1511 = vrot.slane %v1506, %v1510
  %v1517 = vunpack.c.l.b16 %v1502
  %v1518 = vunpack.c.l.b16 %v1503
  %v1519 = vunpack.c.l.b16 %v1504
  %v1520 = vunpack.c.l.b16 %v1505
  %v1521 = vpack.c.b16 %v1518, %v1517
  %v1522 = vpack.c.b16 %v1520, %v1519
  %v1526 = vsel %vm299, %v1501, 0
  %1528 = vmatprep.subr.bf16.mxu0 0
  %1529 = vmatpush1.bf16.msra.mxu0 %v1521
  %1530 = vmatprep.subr.bf16.mxu0 0
  %1531 = vmatpush1.bf16.msra.mxu0 %v1522
  %1532 = vmatprep.subr.bf16.mxu0 0
  %1533 = vmatpush1.bf16.msra.mxu0 0
  %1534 = vmatprep.subr.bf16.mxu0 0
  %1535 = vmatpush1.bf16.msra.mxu0 0
  %1536 = vmatprep.subr.bf16.mxu0 0
  %1537 = vmatpush1.bf16.msra.mxu0 0
  %1538 = vmatprep.subr.bf16.mxu0 0
  %1539 = vmatpush1.bf16.msra.mxu0 0
  %1540 = vmatprep.subr.bf16.mxu0 0
  %1541 = vmatpush1.bf16.msra.mxu0 0
  %1542 = vmatprep.subr.bf16.mxu0 0
  %1543 = vmatpush1.bf16.msra.mxu0 0
  %1544 = vmatprep.subr.bf16.mxu0 0
  %1545 = vmatpush1.bf16.msra.mxu0 0
  %1546 = vmatprep.subr.bf16.mxu0 0
  %1547 = vmatpush1.bf16.msra.mxu0 0
  %1548 = vmatprep.subr.bf16.mxu0 0
  %1549 = vmatpush1.bf16.msra.mxu0 0
  %1550 = vmatprep.subr.bf16.mxu0 0
  %1551 = vmatpush1.bf16.msra.mxu0 0
  %1552 = vmatprep.subr.bf16.mxu0 0
  %1553 = vmatpush1.bf16.msra.mxu0 0
  %1554 = vmatprep.subr.bf16.mxu0 0
  %1555 = vmatpush1.bf16.msra.mxu0 0
  %1556 = vmatprep.subr.bf16.mxu0 0
  %1557 = vmatpush1.bf16.msra.mxu0 0
  %1558 = vmatprep.subr.bf16.mxu0 0
  %1559 = vmatpush1.bf16.msra.mxu0 0
  %1560 = vmatprep.mubr.bf16.mxu0 0
  %1561 = vmatmul.mubr.bf16.gmra.mrb[0].mxu0 %v1526
  %v1562 = vpop.f32.mrb[0].mxu0
  %v1563 = vadd.f32 %v1511, %v1562
  %v1564 = vpop.f32.mrb[0].mxu0
  %v1565 = vpop.f32.mrb[0].mxu0
  %v1566 = vadd.f32 %v1511, %v1565
  %v1567 = vpop.f32.mrb[0].mxu0
  %1568 = vdwg.mxu0
  %v1569 = vmax.f32 %v1563, 0.0
  %v1570 = vmax.f32 %v1566, 0.0
  %v1571 = vpack.c.bf16 %v1570, %v1569
  %v1572 = vld [vmem:[%s12] sm:$0xf]
  %v1573 = vld [vmem:[%s12 + $0x4] sm:$0xf]
  %v1574 = vld [vmem:[%s13] sm:$0x1]
  %v1576 = vlaneseq
  %v1577 = vshrl.u32 %v1576, 7
  %v1578 = vsub.s32 0, %v1577
  %v1579 = vrot.slane %v1574, %v1578
  %v1583 = vunpack.c.l.b16 %v1572
  %v1584 = vunpack.c.l.b16 %v1573
  %v1585 = vpack.c.b16 %v1584, %v1583
  %v1588 = vsel %vm182, %v1571, 0
  %1590 = vmatprep.subr.bf16.mxu0 0
  %1591 = vmatpush1.bf16.msra.mxu0 %v1585
  %1592 = vmatprep.subr.bf16.mxu0 0
  %1593 = vmatpush1.bf16.msra.mxu0 0
  %1594 = vmatprep.subr.bf16.mxu0 0
  %1595 = vmatpush1.bf16.msra.mxu0 0
  %1596 = vmatprep.subr.bf16.mxu0 0
  %1597 = vmatpush1.bf16.msra.mxu0 0
  %1598 = vmatprep.subr.bf16.mxu0 0
  %1599 = vmatpush1.bf16.msra.mxu0 0
  %1600 = vmatprep.subr.bf16.mxu0 0
  %1601 = vmatpush1.bf16.msra.mxu0 0
  %1602 = vmatprep.subr.bf16.mxu0 0
  %1603 = vmatpush1.bf16.msra.mxu0 0
  %1604 = vmatprep.subr.bf16.mxu0 0
  %1605 = vmatpush1.bf16.msra.mxu0 0
  %1606 = vmatprep.subr.bf16.mxu0 0
  %1607 = vmatpush1.bf16.msra.mxu0 0
  %1608 = vmatprep.subr.bf16.mxu0 0
  %1609 = vmatpush1.bf16.msra.mxu0 0
  %1610 = vmatprep.subr.bf16.mxu0 0
  %1611 = vmatpush1.bf16.msra.mxu0 0
  %1612 = vmatprep.subr.bf16.mxu0 0
  %1613 = vmatpush1.bf16.msra.mxu0 0
  %1614 = vmatprep.subr.bf16.mxu0 0
  %1615 = vmatpush1.bf16.msra.mxu0 0
  %1616 = vmatprep.subr.bf16.mxu0 0
  %1617 = vmatpush1.bf16.msra.mxu0 0
  %1618 = vmatprep.subr.bf16.mxu0 0
  %1619 = vmatpush1.bf16.msra.mxu0 0
  %1620 = vmatprep.subr.bf16.mxu0 0
  %1621 = vmatpush1.bf16.msra.mxu0 0
  %1622 = vmatprep.mubr.bf16.mxu0 0
  %1623 = vmatmul.mubr.bf16.gmra.mrb[0].mxu0 %v1588
  %v1624 = vpop.f32.mrb[0].mxu0
  %v1625 = vadd.f32 %v1579, %v1624
  %v1626 = vpop.f32.mrb[0].mxu0
  %v1627 = vpop.f32.mrb[0].mxu0
  %v1628 = vadd.f32 %v1579, %v1627
  %v1629 = vpop.f32.mrb[0].mxu0
  %1630 = vdwg.mxu0
  %1631 = vst [vmem:[%s14] sm:$0xff] %v1625
  %1632 = vst [vmem:[%s14 + $0x8] sm:$0xff] %v1628
  // Predicated region
  $region58: #{meta_gat_forward.1} parent=0 // pred_check
    _
  $region59: #{meta_gat_forward.1} parent=0 // pred_check_branch
    %1634 = sbr.rel (0) target = $region61
  $region60: #{meta_gat_forward.1} parent=0 // pred_region
    _
  $region61: #{meta_gat_forward.1} parent=0 // pred_fallthru
    _
  // Predicated region
  $region62: #{meta_gat_forward.1} parent=0 // pred_check
    _
  $region63: #{meta_gat_forward.1} parent=0 // pred_check_branch
    %1636 = sbr.rel (0) target = $region65
  $region64: #{meta_gat_forward.1} parent=0 // pred_region
    _
  $region65: #{meta_gat_forward.1} parent=0 // pred_fallthru
    _

</llo_original>
